<compile_context>
chip_gen: v6e
topology: v6e:2x2x1
jax: 0.10.0
libtpu: 0.0.40
codegen_flags: <defaults>
</compile_context>

<pallas_src>
import functools

import jax
import jax.numpy as jnp
from jax import lax
from jax.experimental import pallas as pl
from jax.experimental.pallas import tpu as pltpu


def _pconv_kernel(x_ref, wt_ref, w1a_ref, w1b_ref, b_ref, out_ref, ext_ref, *,
                  dim_conv, W, HW_pad, halo, fused):
    # x_ref:   (C, HW_pad)          whole input slab for this batch element
    # wt_ref:  (9, P, dim_conv)     per-tap weights; P = O_p (fused) or dim_conv
    # w1a_ref: (O_p, dim_conv)      1x1 weights for the touched half (unfused path)
    # w1b_ref: (O_p, dim_untouched) 1x1 weights for the untouched half
    # b_ref:   (O_p, 1)             1x1 bias (f32)
    # out_ref: (O_p, HW_pad)
    # ext_ref: (dim_conv, halo + HW_pad + W + 1)  zero-haloed copy of x1 (scratch)
    dc = dim_conv
    cdt = ext_ref.dtype

    # Build the zero halo + place x1.  Strips are re-zeroed every step (cheap,
    # and safe under megacore where a core may not execute grid step 0).
    ext_ref[:, :halo] = jnp.zeros((dc, halo), cdt)
    ext_ref[:, halo + HW_pad: halo + HW_pad + W + 1] = jnp.zeros((dc, W + 1), cdt)
    ext_ref[:, halo:halo + HW_pad] = x_ref[:dc, :]

    # Column masks: in the flattened layout a +-1 lane shift wraps across image
    # rows, so taps with dw=+-1 must zero columns w==0 / w==W-1 (the 3x3 conv's
    # zero padding along W).  H-direction padding is supplied by the halo zeros.
    col = lax.broadcasted_iota(jnp.int32, (1, HW_pad), 1) % W
    not_left = col > 0          # valid for dw == -1
    not_right = col < (W - 1)   # valid for dw == +1

    def tap(k):
        dh, dw = k // 3 - 1, k % 3 - 1
        off = halo + dh * W + dw
        xs = ext_ref[:, off:off + HW_pad]
        if dw == -1:
            xs = jnp.where(not_left, xs, 0)
        elif dw == 1:
            xs = jnp.where(not_right, xs, 0)
        return xs

    # Untouched channels: 1x1 contribution + bias (f32 accumulate).
    acc = jnp.dot(w1b_ref[...], x_ref[dc:, :], preferred_element_type=jnp.float32)
    acc = acc + b_ref[...]

    if fused:
        # wt[k] = W1a @ W3[:, :, kh, kw] folded wrapper-side -> one pass.
        for k in range(9):
            acc = acc + jnp.dot(wt_ref[k], tap(k),
                                preferred_element_type=jnp.float32)
    else:
        # 3x3 conv first (y1), then the touched 1x1; y1 dies right after.
        y1 = jnp.dot(wt_ref[0], tap(0), preferred_element_type=jnp.float32)
        for k in range(1, 9):
            y1 = y1 + jnp.dot(wt_ref[k], tap(k),
                              preferred_element_type=jnp.float32)
        acc = acc + jnp.dot(w1a_ref[...], y1.astype(w1a_ref.dtype),
                            preferred_element_type=jnp.float32)

    out_ref[...] = acc.astype(out_ref.dtype)


def enhanced_partial_conv2d(x, w3, w1, b1, *, n_div=2,
                            compute_dtype=jnp.float32):
    """x: (N, C, H, W) f32. w3: (dc, dc, 3, 3). w1: (O, C). b1: (O,)."""
    N, C, H, W = x.shape
    dc = C // n_div
    du = C - dc
    if du == 0:
        # TODO(synk): n_div=1 (dim_untouched == 0) would need dropping the w1b path.
        raise NotImplementedError("n_div=1 (no untouched channels) not supported")
    O = w1.shape[0]
    HW = H * W

    # Lane/sublane-dense padding (only when needed; no-op for aligned shapes).
    HW_pad = ((HW + 127) // 128) * 128
    O_p = ((O + 7) // 8) * 8

    xf = x.reshape(N, C, HW).astype(compute_dtype)        # free reshape, no copy
    if HW_pad != HW:
        xf = jnp.pad(xf, ((0, 0), (0, 0), (0, HW_pad - HW)))

    # Per-tap 3x3 weights: tap k = kh*3 + kw  <->  (dh, dw) = (kh-1, kw-1).
    w3taps = jnp.transpose(w3, (2, 3, 0, 1)).reshape(9, dc, dc)
    w1a = w1[:, :dc]
    w1b = w1[:, dc:]

    # Fold the 1x1 into the 3x3 taps only when it reduces MXU FLOPs.
    fused = (8 * O) <= (9 * dc)
    if fused:
        wt = jnp.einsum("oc,kcd->kod", w1a, w3taps)        # (9, O, dc)
        wt = jnp.pad(wt, ((0, 0), (0, O_p - O), (0, 0)))
    else:
        wt = w3taps                                        # (9, dc, dc)
    wt = wt.astype(compute_dtype)
    w1a_p = jnp.pad(w1a, ((0, O_p - O), (0, 0))).astype(compute_dtype)
    w1b_p = jnp.pad(w1b, ((0, O_p - O), (0, 0))).astype(compute_dtype)
    b_p = jnp.pad(b1, (0, O_p - O)).reshape(O_p, 1).astype(jnp.float32)

    # Zero-halo geometry: x1 sits at lane offset `halo` (128-aligned, >= W+1) so
    # every 3x3 tap is an in-bounds static slice of the scratch.
    halo = ((W + 1 + 127) // 128) * 128
    ext_len = halo + HW_pad + W + 1

    # Raise the scoped-VMEM limit based on the per-step working set
    # (x + out double buffers + halo scratch), capped to stay safe on v7x.
    per_step = 4 * HW_pad * (2 * C + 2 * O_p + dc)
    vmem_limit = int(min(64 * 2**20, max(32 * 2**20, 2 * per_step)))

    kernel = functools.partial(_pconv_kernel, dim_conv=dc, W=W, HW_pad=HW_pad,
                               halo=halo, fused=fused)

    out = pl.pallas_call(
        kernel,
        out_shape=jax.ShapeDtypeStruct((N, O_p, HW_pad), jnp.float32),
        grid=(N,),
        in_specs=[
            pl.BlockSpec((None, C, HW_pad), lambda n: (n, 0, 0)),   # x (1x traffic)
            pl.BlockSpec(wt.shape, lambda n: (0, 0, 0)),            # taps (resident)
            pl.BlockSpec((O_p, dc), lambda n: (0, 0)),              # w1a (resident)
            pl.BlockSpec((O_p, du), lambda n: (0, 0)),              # w1b (resident)
            pl.BlockSpec((O_p, 1), lambda n: (0, 0)),               # bias (resident)
        ],
        out_specs=pl.BlockSpec((None, O_p, HW_pad), lambda n: (n, 0, 0)),
        scratch_shapes=[pltpu.VMEM((dc, ext_len), compute_dtype)],
        compiler_params=pltpu.CompilerParams(
            dimension_semantics=("parallel",),
            vmem_limit_bytes=vmem_limit),
    )(xf, wt, w1a_p, w1b_p, b_p)

    return out[:, :O, :HW].reshape(N, O, H, W)


def _reference(x, w3, w1, b1, *, n_div=2):
    """Pure-JAX reference using lax.conv (mirrors the PyTorch forward)."""
    N, C, H, W = x.shape
    dc = C // n_div
    O = w1.shape[0]
    x1 = x[:, :dc]
    x2 = x[:, dc:]
    y1 = lax.conv_general_dilated(
        x1, w3, window_strides=(1, 1), padding=((1, 1), (1, 1)),
        dimension_numbers=("NCHW", "OIHW", "NCHW"))
    z = jnp.concatenate([y1, x2], axis=1)
    out = lax.conv_general_dilated(
        z, w1.reshape(O, C, 1, 1), window_strides=(1, 1), padding="VALID",
        dimension_numbers=("NCHW", "OIHW", "NCHW"))
    return out + b1.reshape(1, O, 1, 1)


if __name__ == "__main__":
    def run_case(N, C, H, W, out_channels, n_div, seed):
        dc = C // n_div
        key = jax.random.PRNGKey(seed)
        kx, k3, k1, kb = jax.random.split(key, 4)
        x = jax.random.normal(kx, (N, C, H, W), dtype=jnp.float32)
        w3 = jax.random.normal(k3, (dc, dc, 3, 3), dtype=jnp.float32) * 0.1
        w1 = jax.random.normal(k1, (out_channels, C), dtype=jnp.float32) * 0.1
        b1 = jax.random.normal(kb, (out_channels,), dtype=jnp.float32) * 0.1

        out = enhanced_partial_conv2d(x, w3, w1, b1, n_div=n_div)
        out = jax.block_until_ready(out)
        ref = _reference(x, w3, w1, b1, n_div=n_div)
        assert out.shape == (N, out_channels, H, W)
        assert jnp.allclose(out, ref, atol=5e-4, rtol=5e-4), \
            f"mismatch vs reference for case {(N, C, H, W, out_channels)}"

    # 1) Main small case (unfused 1x1 path, aligned H*W, aligned O).
    run_case(2, 4, 16, 16, 8, 2, 0)
    # 2) Fused-weights path (8*O <= 9*dim_conv).
    run_case(2, 16, 16, 16, 8, 2, 1)
    # 3) Unaligned H*W (100 -> 128) and O (6 -> 8) exercise the padding path.
    run_case(1, 8, 10, 10, 6, 2, 2)

    print("KERNEL_OK")
</pallas_src>

<mosaic_0001>
module attributes {stable_mosaic.version = 11 : i64} {
  func.func @_pconv_kernel(%arg0: i32, %arg1: memref<1x4x256xf32, #tpu.memory_space<vmem>>, %arg2: memref<9x2x2xf32, #tpu.memory_space<vmem>>, %arg3: memref<8x2xf32, #tpu.memory_space<vmem>>, %arg4: memref<8x2xf32, #tpu.memory_space<vmem>>, %arg5: memref<8x1xf32, #tpu.memory_space<vmem>>, %arg6: memref<1x8x256xf32, #tpu.memory_space<vmem>>, %arg7: memref<2x401xf32, #tpu.memory_space<vmem>>) attributes {dimension_semantics = [#tpu.dimension_semantics<parallel>], iteration_bounds = array<i64: 2>, scalar_prefetch = 0 : i64, scratch_operands = 1 : i64, tpu.core_type = #tpu.core_type<tc>, window_params = [{transform_indices = @transform_0, window_bounds = array<i64: 1, 4, 256>}, {pipeline_mode = #tpu.pipeline_mode<synchronous>, transform_indices = @transform_1, window_bounds = array<i64: 9, 2, 2>}, {pipeline_mode = #tpu.pipeline_mode<synchronous>, transform_indices = @transform_2, window_bounds = array<i64: 8, 2>}, {pipeline_mode = #tpu.pipeline_mode<synchronous>, transform_indices = @transform_3, window_bounds = array<i64: 8, 2>}, {pipeline_mode = #tpu.pipeline_mode<synchronous>, transform_indices = @transform_4, window_bounds = array<i64: 8, 1>}, {transform_indices = @transform_5, window_bounds = array<i64: 1, 8, 256>}]} {
    %cst = arith.constant 0.000000e+00 : f32
    %0 = vector.broadcast %cst : f32 to vector<2x128xf32>
    %c0 = arith.constant 0 : index
    %c0_0 = arith.constant 0 : index
    %1 = vector.load %arg7[%c0, %c0_0] : memref<2x401xf32, #tpu.memory_space<vmem>>, vector<2x128xf32>
    tpu.vector_store %arg7[%c0, %c0_0], %0 {strides = array<i32>} : memref<2x401xf32, #tpu.memory_space<vmem>>, vector<2x128xf32>,
    %cst_1 = arith.constant 0.000000e+00 : f32
    %2 = vector.broadcast %cst_1 : f32 to vector<2x17xf32>
    %c0_2 = arith.constant 0 : index
    %c384 = arith.constant 384 : index
    %3 = vector.load %arg7[%c0_2, %c384] : memref<2x401xf32, #tpu.memory_space<vmem>>, vector<2x17xf32>
    tpu.vector_store %arg7[%c0_2, %c384], %2 {strides = array<i32>} : memref<2x401xf32, #tpu.memory_space<vmem>>, vector<2x17xf32>,
    %c0_3 = arith.constant 0 : index
    %c0_4 = arith.constant 0 : index
    %c0_5 = arith.constant 0 : index
    %4 = vector.load %arg1[%c0_3, %c0_4, %c0_5] : memref<1x4x256xf32, #tpu.memory_space<vmem>>, vector<1x2x256xf32>
    %5 = vector.shape_cast %4 : vector<1x2x256xf32> to vector<2x256xf32>
    %c0_6 = arith.constant 0 : index
    %c128 = arith.constant 128 : index
    %6 = vector.load %arg7[%c0_6, %c128] : memref<2x401xf32, #tpu.memory_space<vmem>>, vector<2x256xf32>
    tpu.vector_store %arg7[%c0_6, %c128], %5 {strides = array<i32>} : memref<2x401xf32, #tpu.memory_space<vmem>>, vector<2x256xf32>,
    %7 = tpu.iota {dimensions = array<i32: 1>} : vector<1x256xi32>
    %c16_i32 = arith.constant 16 : i32
    %c0_i32 = arith.constant 0 : i32
    %8 = arith.cmpi eq, %c16_i32, %c0_i32 : i32
    %c1_i32 = arith.constant 1 : i32
    %9 = arith.select %8, %c1_i32, %c16_i32 : i32
    %10 = vector.broadcast %9 : i32 to vector<1x256xi32>
    %11 = arith.remsi %7, %10 : vector<1x256xi32>
    %c0_i32_7 = arith.constant 0 : i32
    %12 = vector.broadcast %c0_i32_7 : i32 to vector<1x256xi32>
    %13 = arith.cmpi ne, %11, %12 : vector<1x256xi32>
    %c0_i32_8 = arith.constant 0 : i32
    %14 = vector.broadcast %c0_i32_8 : i32 to vector<1x256xi32>
    %15 = arith.cmpi slt, %11, %14 : vector<1x256xi32>
    %c0_i32_9 = arith.constant 0 : i32
    %16 = arith.cmpi slt, %9, %c0_i32_9 : i32
    %17 = vector.broadcast %16 : i1 to vector<1x256xi1>
    %18 = vector.broadcast %17 : vector<1x256xi1> to vector<1x256xi1>
    %19 = arith.xori %15, %18 : vector<1x256xi1>
    %20 = arith.andi %19, %13 : vector<1x256xi1>
    %21 = vector.broadcast %9 : i32 to vector<1x256xi32>
    %22 = arith.addi %11, %21 : vector<1x256xi32>
    %23 = arith.select %20, %22, %11 : vector<1x256xi1>, vector<1x256xi32>
    %c0_i32_10 = arith.constant 0 : i32
    %24 = vector.broadcast %c0_i32_10 : i32 to vector<1x256xi32>
    %25 = arith.cmpi sgt, %23, %24 : vector<1x256xi32>
    %c15_i32 = arith.constant 15 : i32
    %26 = vector.broadcast %c15_i32 : i32 to vector<1x256xi32>
    %27 = arith.cmpi slt, %23, %26 : vector<1x256xi32>
    %c0_11 = arith.constant 0 : index
    %c0_12 = arith.constant 0 : index
    %28 = vector.load %arg4[%c0_11, %c0_12] : memref<8x2xf32, #tpu.memory_space<vmem>>, vector<8x2xf32>
    %c0_13 = arith.constant 0 : index
    %c2 = arith.constant 2 : index
    %c0_14 = arith.constant 0 : index
    %29 = vector.load %arg1[%c0_13, %c2, %c0_14] : memref<1x4x256xf32, #tpu.memory_space<vmem>>, vector<1x2x256xf32>
    %30 = vector.shape_cast %29 : vector<1x2x256xf32> to vector<2x256xf32>
    %cst_15 = arith.constant dense<0.000000e+00> : vector<8x256xf32>
    %31 = tpu.matmul %28, %30, %cst_15 {dimension_numbers = #tpu.dot_dimension_numbers<[1], [0], [0], [1], [0, 0, 1, 1], [], []>} : vector<8x2xf32>, vector<2x256xf32>, vector<8x256xf32> -> vector<8x256xf32>
    %c0_16 = arith.constant 0 : index
    %c0_17 = arith.constant 0 : index
    %32 = vector.load %arg5[%c0_16, %c0_17] : memref<8x1xf32, #tpu.memory_space<vmem>>, vector<8x1xf32>
    %33 = vector.broadcast %32 : vector<8x1xf32> to vector<8x256xf32>
    %34 = arith.addf %31, %33 : vector<8x256xf32>
    %c0_18 = arith.constant 0 : index
    %c0_19 = arith.constant 0 : index
    %c0_20 = arith.constant 0 : index
    %35 = vector.load %arg2[%c0_18, %c0_19, %c0_20] : memref<9x2x2xf32, #tpu.memory_space<vmem>>, vector<1x2x2xf32>
    %36 = vector.shape_cast %35 : vector<1x2x2xf32> to vector<2x2xf32>
    %c0_21 = arith.constant 0 : index
    %c111 = arith.constant 111 : index
    %37 = vector.load %arg7[%c0_21, %c111] : memref<2x401xf32, #tpu.memory_space<vmem>>, vector<2x256xf32>
    %c0_i32_22 = arith.constant 0 : i32
    %38 = arith.sitofp %c0_i32_22 : i32 to f32
    %39 = vector.shape_cast %25 : vector<1x256xi1> to vector<1x256xi1>
    %40 = vector.broadcast %39 : vector<1x256xi1> to vector<2x256xi1>
    %41 = vector.broadcast %38 : f32 to vector<2x256xf32>
    %42 = arith.select %40, %37, %41 : vector<2x256xi1>, vector<2x256xf32>
    %cst_23 = arith.constant dense<0.000000e+00> : vector<2x256xf32>
    %43 = tpu.matmul %36, %42, %cst_23 {dimension_numbers = #tpu.dot_dimension_numbers<[1], [0], [0], [1], [0, 0, 1, 1], [], []>} : vector<2x2xf32>, vector<2x256xf32>, vector<2x256xf32> -> vector<2x256xf32>
    %c1 = arith.constant 1 : index
    %c0_24 = arith.constant 0 : index
    %c0_25 = arith.constant 0 : index
    %44 = vector.load %arg2[%c1, %c0_24, %c0_25] : memref<9x2x2xf32, #tpu.memory_space<vmem>>, vector<1x2x2xf32>
    %45 = vector.shape_cast %44 : vector<1x2x2xf32> to vector<2x2xf32>
    %c0_26 = arith.constant 0 : index
    %c112 = arith.constant 112 : index
    %46 = vector.load %arg7[%c0_26, %c112] : memref<2x401xf32, #tpu.memory_space<vmem>>, vector<2x256xf32>
    %cst_27 = arith.constant dense<0.000000e+00> : vector<2x256xf32>
    %47 = tpu.matmul %45, %46, %cst_27 {dimension_numbers = #tpu.dot_dimension_numbers<[1], [0], [0], [1], [0, 0, 1, 1], [], []>} : vector<2x2xf32>, vector<2x256xf32>, vector<2x256xf32> -> vector<2x256xf32>
    %48 = arith.addf %43, %47 : vector<2x256xf32>
    %c2_28 = arith.constant 2 : index
    %c0_29 = arith.constant 0 : index
    %c0_30 = arith.constant 0 : index
    %49 = vector.load %arg2[%c2_28, %c0_29, %c0_30] : memref<9x2x2xf32, #tpu.memory_space<vmem>>, vector<1x2x2xf32>
    %50 = vector.shape_cast %49 : vector<1x2x2xf32> to vector<2x2xf32>
    %c0_31 = arith.constant 0 : index
    %c113 = arith.constant 113 : index
    %51 = vector.load %arg7[%c0_31, %c113] : memref<2x401xf32, #tpu.memory_space<vmem>>, vector<2x256xf32>
    %c0_i32_32 = arith.constant 0 : i32
    %52 = arith.sitofp %c0_i32_32 : i32 to f32
    %53 = vector.shape_cast %27 : vector<1x256xi1> to vector<1x256xi1>
    %54 = vector.broadcast %53 : vector<1x256xi1> to vector<2x256xi1>
    %55 = vector.broadcast %52 : f32 to vector<2x256xf32>
    %56 = arith.select %54, %51, %55 : vector<2x256xi1>, vector<2x256xf32>
    %cst_33 = arith.constant dense<0.000000e+00> : vector<2x256xf32>
    %57 = tpu.matmul %50, %56, %cst_33 {dimension_numbers = #tpu.dot_dimension_numbers<[1], [0], [0], [1], [0, 0, 1, 1], [], []>} : vector<2x2xf32>, vector<2x256xf32>, vector<2x256xf32> -> vector<2x256xf32>
    %58 = arith.addf %48, %57 : vector<2x256xf32>
    %c3 = arith.constant 3 : index
    %c0_34 = arith.constant 0 : index
    %c0_35 = arith.constant 0 : index
    %59 = vector.load %arg2[%c3, %c0_34, %c0_35] : memref<9x2x2xf32, #tpu.memory_space<vmem>>, vector<1x2x2xf32>
    %60 = vector.shape_cast %59 : vector<1x2x2xf32> to vector<2x2xf32>
    %c0_36 = arith.constant 0 : index
    %c127 = arith.constant 127 : index
    %61 = vector.load %arg7[%c0_36, %c127] : memref<2x401xf32, #tpu.memory_space<vmem>>, vector<2x256xf32>
    %c0_i32_37 = arith.constant 0 : i32
    %62 = arith.sitofp %c0_i32_37 : i32 to f32
    %63 = vector.shape_cast %25 : vector<1x256xi1> to vector<1x256xi1>
    %64 = vector.broadcast %63 : vector<1x256xi1> to vector<2x256xi1>
    %65 = vector.broadcast %62 : f32 to vector<2x256xf32>
    %66 = arith.select %64, %61, %65 : vector<2x256xi1>, vector<2x256xf32>
    %cst_38 = arith.constant dense<0.000000e+00> : vector<2x256xf32>
    %67 = tpu.matmul %60, %66, %cst_38 {dimension_numbers = #tpu.dot_dimension_numbers<[1], [0], [0], [1], [0, 0, 1, 1], [], []>} : vector<2x2xf32>, vector<2x256xf32>, vector<2x256xf32> -> vector<2x256xf32>
    %68 = arith.addf %58, %67 : vector<2x256xf32>
    %c4 = arith.constant 4 : index
    %c0_39 = arith.constant 0 : index
    %c0_40 = arith.constant 0 : index
    %69 = vector.load %arg2[%c4, %c0_39, %c0_40] : memref<9x2x2xf32, #tpu.memory_space<vmem>>, vector<1x2x2xf32>
    %70 = vector.shape_cast %69 : vector<1x2x2xf32> to vector<2x2xf32>
    %c0_41 = arith.constant 0 : index
    %c128_42 = arith.constant 128 : index
    %71 = vector.load %arg7[%c0_41, %c128_42] : memref<2x401xf32, #tpu.memory_space<vmem>>, vector<2x256xf32>
    %cst_43 = arith.constant dense<0.000000e+00> : vector<2x256xf32>
    %72 = tpu.matmul %70, %71, %cst_43 {dimension_numbers = #tpu.dot_dimension_numbers<[1], [0], [0], [1], [0, 0, 1, 1], [], []>} : vector<2x2xf32>, vector<2x256xf32>, vector<2x256xf32> -> vector<2x256xf32>
    %73 = arith.addf %68, %72 : vector<2x256xf32>
    %c5 = arith.constant 5 : index
    %c0_44 = arith.constant 0 : index
    %c0_45 = arith.constant 0 : index
    %74 = vector.load %arg2[%c5, %c0_44, %c0_45] : memref<9x2x2xf32, #tpu.memory_space<vmem>>, vector<1x2x2xf32>
    %75 = vector.shape_cast %74 : vector<1x2x2xf32> to vector<2x2xf32>
    %c0_46 = arith.constant 0 : index
    %c129 = arith.constant 129 : index
    %76 = vector.load %arg7[%c0_46, %c129] : memref<2x401xf32, #tpu.memory_space<vmem>>, vector<2x256xf32>
    %c0_i32_47 = arith.constant 0 : i32
    %77 = arith.sitofp %c0_i32_47 : i32 to f32
    %78 = vector.shape_cast %27 : vector<1x256xi1> to vector<1x256xi1>
    %79 = vector.broadcast %78 : vector<1x256xi1> to vector<2x256xi1>
    %80 = vector.broadcast %77 : f32 to vector<2x256xf32>
    %81 = arith.select %79, %76, %80 : vector<2x256xi1>, vector<2x256xf32>
    %cst_48 = arith.constant dense<0.000000e+00> : vector<2x256xf32>
    %82 = tpu.matmul %75, %81, %cst_48 {dimension_numbers = #tpu.dot_dimension_numbers<[1], [0], [0], [1], [0, 0, 1, 1], [], []>} : vector<2x2xf32>, vector<2x256xf32>, vector<2x256xf32> -> vector<2x256xf32>
    %83 = arith.addf %73, %82 : vector<2x256xf32>
    %c6 = arith.constant 6 : index
    %c0_49 = arith.constant 0 : index
    %c0_50 = arith.constant 0 : index
    %84 = vector.load %arg2[%c6, %c0_49, %c0_50] : memref<9x2x2xf32, #tpu.memory_space<vmem>>, vector<1x2x2xf32>
    %85 = vector.shape_cast %84 : vector<1x2x2xf32> to vector<2x2xf32>
    %c0_51 = arith.constant 0 : index
    %c143 = arith.constant 143 : index
    %86 = vector.load %arg7[%c0_51, %c143] : memref<2x401xf32, #tpu.memory_space<vmem>>, vector<2x256xf32>
    %c0_i32_52 = arith.constant 0 : i32
    %87 = arith.sitofp %c0_i32_52 : i32 to f32
    %88 = vector.shape_cast %25 : vector<1x256xi1> to vector<1x256xi1>
    %89 = vector.broadcast %88 : vector<1x256xi1> to vector<2x256xi1>
    %90 = vector.broadcast %87 : f32 to vector<2x256xf32>
    %91 = arith.select %89, %86, %90 : vector<2x256xi1>, vector<2x256xf32>
    %cst_53 = arith.constant dense<0.000000e+00> : vector<2x256xf32>
    %92 = tpu.matmul %85, %91, %cst_53 {dimension_numbers = #tpu.dot_dimension_numbers<[1], [0], [0], [1], [0, 0, 1, 1], [], []>} : vector<2x2xf32>, vector<2x256xf32>, vector<2x256xf32> -> vector<2x256xf32>
    %93 = arith.addf %83, %92 : vector<2x256xf32>
    %c7 = arith.constant 7 : index
    %c0_54 = arith.constant 0 : index
    %c0_55 = arith.constant 0 : index
    %94 = vector.load %arg2[%c7, %c0_54, %c0_55] : memref<9x2x2xf32, #tpu.memory_space<vmem>>, vector<1x2x2xf32>
    %95 = vector.shape_cast %94 : vector<1x2x2xf32> to vector<2x2xf32>
    %c0_56 = arith.constant 0 : index
    %c144 = arith.constant 144 : index
    %96 = vector.load %arg7[%c0_56, %c144] : memref<2x401xf32, #tpu.memory_space<vmem>>, vector<2x256xf32>
    %cst_57 = arith.constant dense<0.000000e+00> : vector<2x256xf32>
    %97 = tpu.matmul %95, %96, %cst_57 {dimension_numbers = #tpu.dot_dimension_numbers<[1], [0], [0], [1], [0, 0, 1, 1], [], []>} : vector<2x2xf32>, vector<2x256xf32>, vector<2x256xf32> -> vector<2x256xf32>
    %98 = arith.addf %93, %97 : vector<2x256xf32>
    %c8 = arith.constant 8 : index
    %c0_58 = arith.constant 0 : index
    %c0_59 = arith.constant 0 : index
    %99 = vector.load %arg2[%c8, %c0_58, %c0_59] : memref<9x2x2xf32, #tpu.memory_space<vmem>>, vector<1x2x2xf32>
    %100 = vector.shape_cast %99 : vector<1x2x2xf32> to vector<2x2xf32>
    %c0_60 = arith.constant 0 : index
    %c145 = arith.constant 145 : index
    %101 = vector.load %arg7[%c0_60, %c145] : memref<2x401xf32, #tpu.memory_space<vmem>>, vector<2x256xf32>
    %c0_i32_61 = arith.constant 0 : i32
    %102 = arith.sitofp %c0_i32_61 : i32 to f32
    %103 = vector.shape_cast %27 : vector<1x256xi1> to vector<1x256xi1>
    %104 = vector.broadcast %103 : vector<1x256xi1> to vector<2x256xi1>
    %105 = vector.broadcast %102 : f32 to vector<2x256xf32>
    %106 = arith.select %104, %101, %105 : vector<2x256xi1>, vector<2x256xf32>
    %cst_62 = arith.constant dense<0.000000e+00> : vector<2x256xf32>
    %107 = tpu.matmul %100, %106, %cst_62 {dimension_numbers = #tpu.dot_dimension_numbers<[1], [0], [0], [1], [0, 0, 1, 1], [], []>} : vector<2x2xf32>, vector<2x256xf32>, vector<2x256xf32> -> vector<2x256xf32>
    %108 = arith.addf %98, %107 : vector<2x256xf32>
    %c0_63 = arith.constant 0 : index
    %c0_64 = arith.constant 0 : index
    %109 = vector.load %arg3[%c0_63, %c0_64] : memref<8x2xf32, #tpu.memory_space<vmem>>, vector<8x2xf32>
    %cst_65 = arith.constant dense<0.000000e+00> : vector<8x256xf32>
    %110 = tpu.matmul %109, %108, %cst_65 {dimension_numbers = #tpu.dot_dimension_numbers<[1], [0], [0], [1], [0, 0, 1, 1], [], []>} : vector<8x2xf32>, vector<2x256xf32>, vector<8x256xf32> -> vector<8x256xf32>
    %111 = arith.addf %34, %110 : vector<8x256xf32>
    %c0_66 = arith.constant 0 : index
    %c0_67 = arith.constant 0 : index
    %c0_68 = arith.constant 0 : index
    %112 = vector.load %arg6[%c0_66, %c0_67, %c0_68] : memref<1x8x256xf32, #tpu.memory_space<vmem>>, vector<1x8x256xf32>
    %113 = vector.shape_cast %112 : vector<1x8x256xf32> to vector<8x256xf32>
    %114 = vector.shape_cast %111 : vector<8x256xf32> to vector<1x8x256xf32>
    tpu.vector_store %arg6[%c0_66, %c0_67, %c0_68], %114 {strides = array<i32>} : memref<1x8x256xf32, #tpu.memory_space<vmem>>, vector<1x8x256xf32>,
    return
  }
  func.func @transform_0(%arg0: i32) -> (i32, i32, i32) {
    %c0_i32 = arith.constant 0 : i32
    %c0_i32_0 = arith.constant 0 : i32
    %c0_i32_1 = arith.constant 0 : i32
    return %arg0, %c0_i32, %c0_i32_0 : i32, i32, i32
  }
  func.func @transform_1(%arg0: i32) -> (i32, i32, i32) {
    %c0_i32 = arith.constant 0 : i32
    %c0_i32_0 = arith.constant 0 : i32
    %c0_i32_1 = arith.constant 0 : i32
    %c0_i32_2 = arith.constant 0 : i32
    return %c0_i32, %c0_i32_0, %c0_i32_1 : i32, i32, i32
  }
  func.func @transform_2(%arg0: i32) -> (i32, i32) {
    %c0_i32 = arith.constant 0 : i32
    %c0_i32_0 = arith.constant 0 : i32
    %c0_i32_1 = arith.constant 0 : i32
    return %c0_i32, %c0_i32_0 : i32, i32
  }
  func.func @transform_3(%arg0: i32) -> (i32, i32) {
    %c0_i32 = arith.constant 0 : i32
    %c0_i32_0 = arith.constant 0 : i32
    %c0_i32_1 = arith.constant 0 : i32
    return %c0_i32, %c0_i32_0 : i32, i32
  }
  func.func @transform_4(%arg0: i32) -> (i32, i32) {
    %c0_i32 = arith.constant 0 : i32
    %c0_i32_0 = arith.constant 0 : i32
    %c0_i32_1 = arith.constant 0 : i32
    return %c0_i32, %c0_i32_0 : i32, i32
  }
  func.func @transform_5(%arg0: i32) -> (i32, i32, i32) {
    %c0_i32 = arith.constant 0 : i32
    %c0_i32_0 = arith.constant 0 : i32
    %c0_i32_1 = arith.constant 0 : i32
    return %arg0, %c0_i32, %c0_i32_0 : i32, i32, i32
  }
}

</mosaic_0001>

<llo_original>
// kernel: tpu_custom_call.1
$region0: #{tpu_custom_call.1}
  #allocation0 [shape = 'u32[]', space=smem, size = 0x4, offset = 0x4, fixed_abs, tag = 'smem constant byte address 0x4 - core index']
  #allocation1 [shape = 'u32[144,128]{1,0:T(1,128)}', space=vmem, size = 0x12000, scoped, tag = 'internal scratch']
  #allocation2 [shape = 'f32[2,401]{1,0:T(2,128)}', space=vmem, size = 0x1000, scoped, tag = 'scratch operand']
  %s0 = inlined_call_operand.vmem [shape: f32[2,4,256], index: 0, kind: input, shape index: {}]
  %s1 = inlined_call_operand.vmem [shape: f32[9,2,2], index: 1, kind: input, shape index: {}]
  %s2 = inlined_call_operand.vmem [shape: f32[8,2], index: 2, kind: input, shape index: {}]
  %s3 = inlined_call_operand.vmem [shape: f32[8,2], index: 3, kind: input, shape index: {}]
  %s4 = inlined_call_operand.vmem [shape: f32[8,1], index: 4, kind: input, shape index: {}]
  %s5 = inlined_call_operand.hbm [shape: f32[2,8,256], index: 5, kind: output, shape index: {}]
  %s6 = sld [smem:[#allocation0]]
  $region53: #{tpu_custom_call.1} parent=0
    _
  %s8 = ssub.s32 1, %s6
  %s9 = scalar_select 0, %s8, %s6
  $region1: #{tpu_custom_call.1} parent=0
    #allocation3 [shape = 'u8[16384]{0}', space=vmem, size = 0x4000, scoped, tag = 'output window, operand 0']
    #allocation4 [shape = 's32[2]{0}', space=sflag, size = 0x8, scoped, tag = 'scoped memory for tpu_custom_call.1']
    %10 = vsyncpa [#allocation4], 0
    %s11 = scalar_lea.sflag [#allocation4], 1
    %12 = vsyncpa %s11, 0
    loop: start=0, step=1, limit=4
    $region2: #{tpu_custom_call.1} parent=1 // loop_pre_header
      _
    $region3: #{tpu_custom_call.1} parent=1 // loop_header
      %s14 = sphi 0, %s18
      %p15 = scmp.ge.s32.totalorder %s14, 4
      %s24 = sphi 0, %s26
      %s27 = sphi 0, %s24
      %s28 = sphi 0, %s27
      %s44 = sphi 0, %s28
      %s48 = sphi 0, %s48
      %s50 = sphi 0, %s48
      %s51 = sphi 0, %s50
      %s65 = sphi 0, %s51
      %s69 = sphi 0, %s69
      %s71 = sphi 0, %s69
      %s72 = sphi 0, %s71
      %s86 = sphi 0, %s72
      %s90 = sphi 0, %s90
      %s92 = sphi 0, %s90
      %s93 = sphi 0, %s92
      %s107 = sphi 0, %s93
      %s111 = sphi 0, %s111
      %s113 = sphi 0, %s111
      %s114 = sphi 0, %s113
      %s128 = sphi 0, %s114
      %s134 = sphi 0, %s136
      %s137 = sphi 0, %s134
      %s138 = sphi 0, %s137
      %s154 = sphi 0, %s138
    $region4: #{tpu_custom_call.1} parent=1 // loop_header_branch
      %17 = sbr.rel (%p15) target = $region8
    $region5: #{tpu_custom_call.1} parent=1 // loop_body
      %s19 = ssub.s32 %s14, 1
      %s20 = ssub.s32 %s14, 2
      %s21 = sadd.s32 %s14, 1
      %s22 = ssub.s32 %s14, %s21
      %p23 = scmp.eq.s32.totalorder %s22, 0
      %s25 = sadd.s32 %s24, 1
      %s26 = scalar_select %p23, %s24, %s25
      %p29 = pneg %p23
      %p30 = scmp.eq.s32.totalorder %s14, 1
      %p31 = por %p29, %p30
      %p32 = scmp.ne.s32.totalorder %s24, %s27
      %p33 = scmp.eq.s32.totalorder %s14, 0
      %p34 = por %p32, %p33
      %p35 = scmp.ne.s32.totalorder %s24, %s27
      %p36 = scmp.eq.s32.totalorder %s19, 1
      %p37 = por %p35, %p36
      %p38 = scmp.ne.s32.totalorder %s27, %s28
      %p39 = scmp.eq.s32.totalorder %s19, 0
      %p40 = por %p38, %p39
      %p41 = scmp.ne.s32.totalorder %s27, %s28
      %p42 = scmp.eq.s32.totalorder %s20, 1
      %p43 = por %p41, %p42
      %p45 = scmp.ne.s32.totalorder %s28, %s44
      %p46 = scmp.eq.s32.totalorder %s20, 0
      %p47 = por %p45, %p46
      %s49 = sadd.s32 %s48, 1
      %p52 = scmp.eq.s32.totalorder %s14, 1
      %p53 = scmp.ne.s32.totalorder %s48, %s50
      %p54 = scmp.eq.s32.totalorder %s14, 0
      %p55 = por %p53, %p54
      %p56 = scmp.ne.s32.totalorder %s48, %s50
      %p57 = scmp.eq.s32.totalorder %s19, 1
      %p58 = por %p56, %p57
      %p59 = scmp.ne.s32.totalorder %s50, %s51
      %p60 = scmp.eq.s32.totalorder %s19, 0
      %p61 = por %p59, %p60
      %p62 = scmp.ne.s32.totalorder %s50, %s51
      %p63 = scmp.eq.s32.totalorder %s20, 1
      %p64 = por %p62, %p63
      %p66 = scmp.ne.s32.totalorder %s51, %s65
      %p67 = scmp.eq.s32.totalorder %s20, 0
      %p68 = por %p66, %p67
      %s70 = sadd.s32 %s69, 1
      %p73 = scmp.eq.s32.totalorder %s14, 1
      %p74 = scmp.ne.s32.totalorder %s69, %s71
      %p75 = scmp.eq.s32.totalorder %s14, 0
      %p76 = por %p74, %p75
      %p77 = scmp.ne.s32.totalorder %s69, %s71
      %p78 = scmp.eq.s32.totalorder %s19, 1
      %p79 = por %p77, %p78
      %p80 = scmp.ne.s32.totalorder %s71, %s72
      %p81 = scmp.eq.s32.totalorder %s19, 0
      %p82 = por %p80, %p81
      %p83 = scmp.ne.s32.totalorder %s71, %s72
      %p84 = scmp.eq.s32.totalorder %s20, 1
      %p85 = por %p83, %p84
      %p87 = scmp.ne.s32.totalorder %s72, %s86
      %p88 = scmp.eq.s32.totalorder %s20, 0
      %p89 = por %p87, %p88
      %s91 = sadd.s32 %s90, 1
      %p94 = scmp.eq.s32.totalorder %s14, 1
      %p95 = scmp.ne.s32.totalorder %s90, %s92
      %p96 = scmp.eq.s32.totalorder %s14, 0
      %p97 = por %p95, %p96
      %p98 = scmp.ne.s32.totalorder %s90, %s92
      %p99 = scmp.eq.s32.totalorder %s19, 1
      %p100 = por %p98, %p99
      %p101 = scmp.ne.s32.totalorder %s92, %s93
      %p102 = scmp.eq.s32.totalorder %s19, 0
      %p103 = por %p101, %p102
      %p104 = scmp.ne.s32.totalorder %s92, %s93
      %p105 = scmp.eq.s32.totalorder %s20, 1
      %p106 = por %p104, %p105
      %p108 = scmp.ne.s32.totalorder %s93, %s107
      %p109 = scmp.eq.s32.totalorder %s20, 0
      %p110 = por %p108, %p109
      %s112 = sadd.s32 %s111, 1
      %p115 = scmp.eq.s32.totalorder %s14, 1
      %p116 = scmp.ne.s32.totalorder %s111, %s113
      %p117 = scmp.eq.s32.totalorder %s14, 0
      %p118 = por %p116, %p117
      %p119 = scmp.ne.s32.totalorder %s111, %s113
      %p120 = scmp.eq.s32.totalorder %s19, 1
      %p121 = por %p119, %p120
      %p122 = scmp.ne.s32.totalorder %s113, %s114
      %p123 = scmp.eq.s32.totalorder %s19, 0
      %p124 = por %p122, %p123
      %p125 = scmp.ne.s32.totalorder %s113, %s114
      %p126 = scmp.eq.s32.totalorder %s20, 1
      %p127 = por %p125, %p126
      %p129 = scmp.ne.s32.totalorder %s114, %s128
      %p130 = scmp.eq.s32.totalorder %s20, 0
      %p131 = por %p129, %p130
      %s132 = ssub.s32 %s14, %s21
      %p133 = scmp.eq.s32.totalorder %s132, 0
      %s135 = sadd.s32 %s134, 1
      %s136 = scalar_select %p133, %s134, %s135
      %p139 = pneg %p133
      %p140 = scmp.eq.s32.totalorder %s14, 1
      %p141 = por %p139, %p140
      %p142 = scmp.ne.s32.totalorder %s134, %s137
      %p143 = scmp.eq.s32.totalorder %s14, 0
      %p144 = por %p142, %p143
      %p145 = scmp.ne.s32.totalorder %s134, %s137
      %p146 = scmp.eq.s32.totalorder %s19, 1
      %p147 = por %p145, %p146
      %p148 = scmp.ne.s32.totalorder %s137, %s138
      %p149 = scmp.eq.s32.totalorder %s19, 0
      %p150 = por %p148, %p149
      %p151 = scmp.ne.s32.totalorder %s137, %s138
      %p152 = scmp.eq.s32.totalorder %s20, 1
      %p153 = por %p151, %p152
      %p155 = scmp.ne.s32.totalorder %s138, %s154
      %p156 = scmp.eq.s32.totalorder %s20, 0
      %p157 = por %p155, %p156
      %p158 = scmp.le.s32.totalorder 1, %s14
      %p159 = scmp.lt.s32.totalorder %s14, 3
      %p160 = pnand %p158, %p159
      %p161 = pneg %p160
      // Predicated region
      $region9: #{tpu_custom_call.1} parent=5 // pred_check
        _
      $region10: #{tpu_custom_call.1} parent=5 // pred_check_branch
        %163 = sbr.rel (%p160) target = $region12
      $region11: #{tpu_custom_call.1} parent=5 // pred_region
        %s164 = ssub.s32 %s14, 1
        // Predicated region
        $region13: #{tpu_custom_call.1} parent=11 // pred_check
          %p165 = pneg %p61
        $region14: #{tpu_custom_call.1} parent=11 // pred_check_branch
          %167 = sbr.rel (%p165) target = $region16
        $region15: #{tpu_custom_call.1} parent=11 // pred_region
          _
        $region16: #{tpu_custom_call.1} parent=11 // pred_fallthru
          _
        // Predicated region
        $region17: #{tpu_custom_call.1} parent=11 // pred_check
          %p168 = pneg %p82
        $region18: #{tpu_custom_call.1} parent=11 // pred_check_branch
          %170 = sbr.rel (%p168) target = $region20
        $region19: #{tpu_custom_call.1} parent=11 // pred_region
          _
        $region20: #{tpu_custom_call.1} parent=11 // pred_fallthru
          _
        // Predicated region
        $region21: #{tpu_custom_call.1} parent=11 // pred_check
          %p171 = pneg %p103
        $region22: #{tpu_custom_call.1} parent=11 // pred_check_branch
          %173 = sbr.rel (%p171) target = $region24
        $region23: #{tpu_custom_call.1} parent=11 // pred_region
          _
        $region24: #{tpu_custom_call.1} parent=11 // pred_fallthru
          _
        // Predicated region
        $region25: #{tpu_custom_call.1} parent=11 // pred_check
          %p174 = pneg %p124
        $region26: #{tpu_custom_call.1} parent=11 // pred_check_branch
          %176 = sbr.rel (%p174) target = $region28
        $region27: #{tpu_custom_call.1} parent=11 // pred_region
          _
        $region28: #{tpu_custom_call.1} parent=11 // pred_fallthru
          _
      $region12: #{tpu_custom_call.1} parent=5 // pred_fallthru
        _
      %p177 = scmp.lt.s32.totalorder %s14, 2
      // Predicated region
      $region29: #{tpu_custom_call.1} parent=5 // pred_check
        %p178 = pneg %p177
      $region30: #{tpu_custom_call.1} parent=5 // pred_check_branch
        %180 = sbr.rel (%p178) target = $region32
      $region31: #{tpu_custom_call.1} parent=5 // pred_region
        // Predicated region
        $region33: #{tpu_custom_call.1} parent=31 // pred_check
          %p181 = pneg %p34
        $region34: #{tpu_custom_call.1} parent=31 // pred_check_branch
          %183 = sbr.rel (%p181) target = $region36
        $region35: #{tpu_custom_call.1} parent=31 // pred_region
          %p184 = scmp.lt.s32.totalorder %s14, 1
          %s185 = scalar_select %p184, %s14, 1
          %s186 = smul.addr %s185, 2
          %s187 = smul.addr %s186, 4
          %s188 = scalar_lea.vmem %s0, %s187
        $region36: #{tpu_custom_call.1} parent=31 // pred_fallthru
          _
      $region32: #{tpu_custom_call.1} parent=5 // pred_fallthru
        _
      %p189 = scmp.le.s32.totalorder 1, %s14
      %p190 = scmp.lt.s32.totalorder %s14, 3
      %p191 = pnand %p189, %p190
      %p192 = pneg %p191
      // Predicated region
      $region37: #{tpu_custom_call.1} parent=5 // pred_check
        _
      $region38: #{tpu_custom_call.1} parent=5 // pred_check_branch
        %194 = sbr.rel (%p191) target = $region40
      $region39: #{tpu_custom_call.1} parent=5 // pred_region
        %s195 = ssub.s32 %s14, 1
        %p196 = scmp.lt.s32.totalorder %s19, 1
        %s197 = scalar_select %p196, %s19, 1
        %s198 = smul.addr %s197, 2
        %s199 = smul.addr %s198, 4
        %s200 = scalar_lea.vmem %s0, %s199
        %p201 = pneg %p40
        %p202 = pneg %p37
        %p203 = pneg %p61
        %p204 = pneg %p58
        %p205 = pneg %p82
        %p206 = pneg %p79
        %p207 = pneg %p103
        %p208 = pneg %p100
        %p209 = pneg %p124
        %p210 = pneg %p121
        %p211 = pneg %p150
        %p212 = pneg %p147
        %s213 = sand.u32 %s137, 1
        %s214 = scalar_lea.sflag [#allocation4], %s213
        %s215 = sand.u32 %s137, 1
        %s216 = smul.addr %s215, 16
        %s217 = scalar_lea.vmem [#allocation3], %s216
        %p218 = scmp.lt.s32.totalorder %s19, 1
        %s219 = scalar_select %p218, %s19, 1
        %s220 = smul.addr %s219, 2
        %s221 = smul.addr %s220, 4
        %s222 = scalar_lea.vmem %s0, %s221
        %223 = vst [vmem:[#allocation2] sm:$0x3] 0.0
        %vm224 = vcmask 132096
        %225 = vst.msk [vmem:[#allocation2 + $0x6] sm:$0x3] %vm224, 0.0
        %v226 = vld [vmem:[%s222] sm:$0x33]
        %v229 = vunpack.c.l.s4 1983009808
        %v230 = vunpack.c.0.s8 %v229
        %v231 = vlaneseq
        %v232 = vshrl.u32 %v231, 7
        %v233 = vsub.s32 %v230, %v232
        %v234 = vrot.slane %v226, %v233
        %236 = vst [vmem:[#allocation2 + $0x2] sm:$0xf] %v234
        %v237 = vlaneseq
        %v238 = vand.u32 %v237, 127
        %v239 = vadd.s32 %v238, 128
        %vm240 = vcmp.lt.s32.totalorder %v238, 0
        %v241 = vsub.s32 0, %v238
        %v242 = vsel %vm240, %v241, %v238
        %v243 = vshrl.u32 %v242, 4
        %v244 = vand.u32 %v242, 15
        %v245 = vsub.s32 0, %v244
        %v246 = vsel %vm240, %v245, %v244
        %vm247 = vcmp.lt.s32.totalorder %v239, 0
        %v248 = vsub.s32 0, %v239
        %v249 = vsel %vm247, %v248, %v239
        %v250 = vshrl.u32 %v249, 4
        %v251 = vand.u32 %v249, 15
        %v252 = vsub.s32 0, %v251
        %v253 = vsel %vm247, %v252, %v251
        %vm254 = vcmp.ne.s32.totalorder %v246, 0
        %vm255 = vcmp.ne.s32.totalorder %v253, 0
        %vm256 = vcmp.lt.s32.totalorder %v246, 0
        %vm257 = vcmp.lt.s32.totalorder %v253, 0
        %vm258 = vmand %vm256, %vm254
        %vm259 = vmand %vm257, %vm255
        %v260 = vadd.s32 %v246, 16
        %v261 = vadd.s32 %v253, 16
        %v262 = vsel %vm258, %v260, %v246
        %v263 = vsel %vm259, %v261, %v253
        %vm264 = vcmp.gt.s32.totalorder %v262, 0
        %vm265 = vcmp.gt.s32.totalorder %v263, 0
        %vm266 = vcmp.lt.s32.totalorder %v262, 15
        %vm267 = vcmp.lt.s32.totalorder %v263, 15
        %v268 = vld [vmem:[%s3] sm:$0xff]
        %v269 = vld [vmem:[%s222] sm:$0xcc]
        %v270 = vld [vmem:[%s4] sm:$0xff]
        %272 = vset.pattern.permute.xlu0 0
        %273 = vperm.xlu0 %272, %v270
        %v274 = vpop.permute.xlu0 %273
        %v277 = vcombine.high %v269, %v269
        %v278 = vrot.slane %v269, 2
        %v279 = vrot.slane %v277, 2
        %vm280 = vcmask 15360
        %v282 = vsel %vm280, %v268, 0
        %vm284 = vcmask 1041408
        %v285 = vsel %vm284, %v278, 0
        %v287 = vsel %vm284, %v279, 0
        %289 = vmatprep.subr.mxu0 0.0
        %290 = vmatpush1.msra.mxu0 0.0
        %291 = vmatprep.subr.mxu0 0.0
        %292 = vmatpush1.msra.mxu0 0.0
        %293 = vmatprep.subr.mxu0 0.0
        %294 = vmatpush1.msra.mxu0 0.0
        %295 = vmatprep.subr.mxu0 0.0
        %296 = vmatpush1.msra.mxu0 0.0
        %297 = vmatprep.subr.mxu0 0.0
        %298 = vmatpush1.msra.mxu0 0.0
        %299 = vmatprep.subr.mxu0 0.0
        %300 = vmatpush1.msra.mxu0 0.0
        %301 = vmatprep.subr.mxu0 0.0
        %302 = vmatpush1.msra.mxu0 0.0
        %303 = vmatprep.subr.mxu0 0.0
        %304 = vmatpush1.msra.mxu0 0.0
        %305 = vmatprep.subr.mxu0 0.0
        %306 = vmatpush1.msra.mxu0 0.0
        %307 = vmatprep.subr.mxu0 0.0
        %308 = vmatpush1.msra.mxu0 0.0
        %309 = vmatprep.subr.mxu0 0.0
        %310 = vmatpush1.msra.mxu0 0.0
        %311 = vmatprep.subr.mxu0 0.0
        %312 = vmatpush1.msra.mxu0 0.0
        %313 = vmatprep.subr.mxu0 0.0
        %314 = vmatpush1.msra.mxu0 0.0
        %315 = vmatprep.subr.mxu0 0.0
        %316 = vmatpush1.msra.mxu0 0.0
        %317 = vmatprep.subr.mxu0 0.0
        %318 = vmatpush1.msra.mxu0 0.0
        %319 = vmatprep.subr.mxu0 %v287
        %320 = vmatpush1.msra.mxu0 %v285
        %321 = vmatprep.subr.mxu0 0.0
        %322 = vmatpush2.msra.mxu0 0.0
        %323 = vmatprep.subr.mxu0 0.0
        %324 = vmatpush2.msra.mxu0 0.0
        %325 = vmatprep.subr.mxu0 0.0
        %326 = vmatpush2.msra.mxu0 0.0
        %327 = vmatprep.subr.mxu0 0.0
        %328 = vmatpush2.msra.mxu0 0.0
        %329 = vmatprep.subr.mxu0 0.0
        %330 = vmatpush2.msra.mxu0 0.0
        %331 = vmatprep.subr.mxu0 0.0
        %332 = vmatpush2.msra.mxu0 0.0
        %333 = vmatprep.subr.mxu0 0.0
        %334 = vmatpush2.msra.mxu0 0.0
        %335 = vmatprep.subr.mxu0 0.0
        %336 = vmatpush2.msra.mxu0 0.0
        %337 = vmatprep.subr.mxu0 0.0
        %338 = vmatpush2.msra.mxu0 0.0
        %339 = vmatprep.subr.mxu0 0.0
        %340 = vmatpush2.msra.mxu0 0.0
        %341 = vmatprep.subr.mxu0 0.0
        %342 = vmatpush2.msra.mxu0 0.0
        %343 = vmatprep.subr.mxu0 0.0
        %344 = vmatpush2.msra.mxu0 0.0
        %345 = vmatprep.subr.mxu0 0.0
        %346 = vmatpush2.msra.mxu0 0.0
        %347 = vmatprep.subr.mxu0 0.0
        %348 = vmatpush2.msra.mxu0 0.0
        %349 = vmatprep.subr.mxu0 0.0
        %350 = vmatpush2.msra.mxu0 0.0
        %351 = vmatprep.subr.mxu0 0.0
        %352 = vmatpush2.msra.mxu0 0.0
        %353 = vmatprep.mubr.f32.mxu0 0.0
        %354 = vmatmul.mubr.f32.gmra.mxu0 %v282
        %v355 = vpop.f32.mrf.mxu0
        %v356 = vadd.f32 %v274, %v355
        %v357 = vpop.f32.mrf.mxu0
        %v358 = vadd.f32 %v274, %v357
        %359 = vdwg.mxu0
        %v360 = vld [vmem:[%s1] sm:$0x3]
        %v361 = vld [vmem:[#allocation2] sm:$0x3f]
        %v362 = vsel %vm264, 1, 0
        %v363 = vsel %vm265, 1, 0
        %vm364 = vcmp.eq.s32.totalorder %v362, 1
        %vm365 = vcmp.eq.s32.totalorder %v363, 1
        %v367 = vcombine.high %v361, %v361
        %v369 = vunpack.c.l.s4 1983009808
        %v370 = vunpack.c.0.s8 %v369
        %v371 = vlaneseq
        %v372 = vshrl.u32 %v371, 7
        %v373 = vsub.s32 %v370, %v372
        %v374 = vrot.slane %v361, %v373
        %v376 = vunpack.c.l.s4 1983009808
        %v377 = vunpack.c.0.s8 %v376
        %v378 = vlaneseq
        %v379 = vshrl.u32 %v378, 7
        %v380 = vsub.s32 %v377, %v379
        %v381 = vrot.slane %v367, %v380
        %v382 = vcombine.high %v374, %v374
        %383 = vrot.lane.b32.xlu0 %v374, 17
        %v384 = vpop.permute.xlu0 %383
        %385 = vrot.lane.b32.xlu0 %v382, 17
        %v386 = vpop.permute.xlu0 %385
        %387 = vrot.lane.b32.xlu0 %v381, 17
        %v388 = vpop.permute.xlu0 %387
        %vm389 = vcmask 138240
        %v390 = vsel %vm389, %v384, %v386
        %v391 = vsel %vm389, %v386, %v388
        %v394 = vsel %vm364, %v390, 0.0
        %v395 = vsel %vm365, %v391, 0.0
        %s396 = scalar_lea.vmem %s1, 2
        %v397 = vld [vmem:[%s396] sm:$0x3]
        %398 = vrot.lane.b32.xlu0 %v374, 16
        %v399 = vpop.permute.xlu0 %398
        %400 = vrot.lane.b32.xlu0 %v382, 16
        %v401 = vpop.permute.xlu0 %400
        %402 = vrot.lane.b32.xlu0 %v381, 16
        %v403 = vpop.permute.xlu0 %402
        %vm404 = vcmask 130048
        %v405 = vsel %vm404, %v399, %v401
        %v406 = vsel %vm404, %v401, %v403
        %v408 = vsel %vm280, %v397, 0
        %v410 = vsel %vm284, %v405, 0
        %v412 = vsel %vm284, %v406, 0
        %414 = vmatprep.subr.mxu0 0.0
        %415 = vmatpush1.msra.mxu0 0.0
        %416 = vmatprep.subr.mxu0 0.0
        %417 = vmatpush1.msra.mxu0 0.0
        %418 = vmatprep.subr.mxu0 0.0
        %419 = vmatpush1.msra.mxu0 0.0
        %420 = vmatprep.subr.mxu0 0.0
        %421 = vmatpush1.msra.mxu0 0.0
        %422 = vmatprep.subr.mxu0 0.0
        %423 = vmatpush1.msra.mxu0 0.0
        %424 = vmatprep.subr.mxu0 0.0
        %425 = vmatpush1.msra.mxu0 0.0
        %426 = vmatprep.subr.mxu0 0.0
        %427 = vmatpush1.msra.mxu0 0.0
        %428 = vmatprep.subr.mxu0 0.0
        %429 = vmatpush1.msra.mxu0 0.0
        %430 = vmatprep.subr.mxu0 0.0
        %431 = vmatpush1.msra.mxu0 0.0
        %432 = vmatprep.subr.mxu0 0.0
        %433 = vmatpush1.msra.mxu0 0.0
        %434 = vmatprep.subr.mxu0 0.0
        %435 = vmatpush1.msra.mxu0 0.0
        %436 = vmatprep.subr.mxu0 0.0
        %437 = vmatpush1.msra.mxu0 0.0
        %438 = vmatprep.subr.mxu0 0.0
        %439 = vmatpush1.msra.mxu0 0.0
        %440 = vmatprep.subr.mxu0 0.0
        %441 = vmatpush1.msra.mxu0 0.0
        %442 = vmatprep.subr.mxu0 0.0
        %443 = vmatpush1.msra.mxu0 0.0
        %444 = vmatprep.subr.mxu0 %v412
        %445 = vmatpush1.msra.mxu0 %v410
        %446 = vmatprep.subr.mxu0 0.0
        %447 = vmatpush2.msra.mxu0 0.0
        %448 = vmatprep.subr.mxu0 0.0
        %449 = vmatpush2.msra.mxu0 0.0
        %450 = vmatprep.subr.mxu0 0.0
        %451 = vmatpush2.msra.mxu0 0.0
        %452 = vmatprep.subr.mxu0 0.0
        %453 = vmatpush2.msra.mxu0 0.0
        %454 = vmatprep.subr.mxu0 0.0
        %455 = vmatpush2.msra.mxu0 0.0
        %456 = vmatprep.subr.mxu0 0.0
        %457 = vmatpush2.msra.mxu0 0.0
        %458 = vmatprep.subr.mxu0 0.0
        %459 = vmatpush2.msra.mxu0 0.0
        %460 = vmatprep.subr.mxu0 0.0
        %461 = vmatpush2.msra.mxu0 0.0
        %462 = vmatprep.subr.mxu0 0.0
        %463 = vmatpush2.msra.mxu0 0.0
        %464 = vmatprep.subr.mxu0 0.0
        %465 = vmatpush2.msra.mxu0 0.0
        %466 = vmatprep.subr.mxu0 0.0
        %467 = vmatpush2.msra.mxu0 0.0
        %468 = vmatprep.subr.mxu0 0.0
        %469 = vmatpush2.msra.mxu0 0.0
        %470 = vmatprep.subr.mxu0 0.0
        %471 = vmatpush2.msra.mxu0 0.0
        %472 = vmatprep.subr.mxu0 0.0
        %473 = vmatpush2.msra.mxu0 0.0
        %474 = vmatprep.subr.mxu0 0.0
        %475 = vmatpush2.msra.mxu0 0.0
        %476 = vmatprep.subr.mxu0 0.0
        %477 = vmatpush2.msra.mxu0 0.0
        %478 = vmatprep.mubr.f32.mxu0 0.0
        %479 = vmatmul.mubr.f32.gmra.mxu0 %v408
        %v480 = vpop.f32.mrf.mxu0
        %v481 = vadd.f32 0.0, %v480
        %v482 = vpop.f32.mrf.mxu0
        %v483 = vadd.f32 0.0, %v482
        %484 = vdwg.mxu0
        %v486 = vsel %vm280, %v360, 0
        %v489 = vsel %vm284, %v394, 0
        %v492 = vsel %vm284, %v395, 0
        %494 = vmatprep.subr.mxu0 0.0
        %495 = vmatpush1.msra.mxu0 0.0
        %496 = vmatprep.subr.mxu0 0.0
        %497 = vmatpush1.msra.mxu0 0.0
        %498 = vmatprep.subr.mxu0 0.0
        %499 = vmatpush1.msra.mxu0 0.0
        %500 = vmatprep.subr.mxu0 0.0
        %501 = vmatpush1.msra.mxu0 0.0
        %502 = vmatprep.subr.mxu0 0.0
        %503 = vmatpush1.msra.mxu0 0.0
        %504 = vmatprep.subr.mxu0 0.0
        %505 = vmatpush1.msra.mxu0 0.0
        %506 = vmatprep.subr.mxu0 0.0
        %507 = vmatpush1.msra.mxu0 0.0
        %508 = vmatprep.subr.mxu0 0.0
        %509 = vmatpush1.msra.mxu0 0.0
        %510 = vmatprep.subr.mxu0 0.0
        %511 = vmatpush1.msra.mxu0 0.0
        %512 = vmatprep.subr.mxu0 0.0
        %513 = vmatpush1.msra.mxu0 0.0
        %514 = vmatprep.subr.mxu0 0.0
        %515 = vmatpush1.msra.mxu0 0.0
        %516 = vmatprep.subr.mxu0 0.0
        %517 = vmatpush1.msra.mxu0 0.0
        %518 = vmatprep.subr.mxu0 0.0
        %519 = vmatpush1.msra.mxu0 0.0
        %520 = vmatprep.subr.mxu0 0.0
        %521 = vmatpush1.msra.mxu0 0.0
        %522 = vmatprep.subr.mxu0 0.0
        %523 = vmatpush1.msra.mxu0 0.0
        %524 = vmatprep.subr.mxu0 %v492
        %525 = vmatpush1.msra.mxu0 %v489
        %526 = vmatprep.subr.mxu0 0.0
        %527 = vmatpush2.msra.mxu0 0.0
        %528 = vmatprep.subr.mxu0 0.0
        %529 = vmatpush2.msra.mxu0 0.0
        %530 = vmatprep.subr.mxu0 0.0
        %531 = vmatpush2.msra.mxu0 0.0
        %532 = vmatprep.subr.mxu0 0.0
        %533 = vmatpush2.msra.mxu0 0.0
        %534 = vmatprep.subr.mxu0 0.0
        %535 = vmatpush2.msra.mxu0 0.0
        %536 = vmatprep.subr.mxu0 0.0
        %537 = vmatpush2.msra.mxu0 0.0
        %538 = vmatprep.subr.mxu0 0.0
        %539 = vmatpush2.msra.mxu0 0.0
        %540 = vmatprep.subr.mxu0 0.0
        %541 = vmatpush2.msra.mxu0 0.0
        %542 = vmatprep.subr.mxu0 0.0
        %543 = vmatpush2.msra.mxu0 0.0
        %544 = vmatprep.subr.mxu0 0.0
        %545 = vmatpush2.msra.mxu0 0.0
        %546 = vmatprep.subr.mxu0 0.0
        %547 = vmatpush2.msra.mxu0 0.0
        %548 = vmatprep.subr.mxu0 0.0
        %549 = vmatpush2.msra.mxu0 0.0
        %550 = vmatprep.subr.mxu0 0.0
        %551 = vmatpush2.msra.mxu0 0.0
        %552 = vmatprep.subr.mxu0 0.0
        %553 = vmatpush2.msra.mxu0 0.0
        %554 = vmatprep.subr.mxu0 0.0
        %555 = vmatpush2.msra.mxu0 0.0
        %556 = vmatprep.subr.mxu0 0.0
        %557 = vmatpush2.msra.mxu0 0.0
        %558 = vmatprep.mubr.f32.mxu0 0.0
        %559 = vmatmul.mubr.f32.gmra.mxu0 %v486
        %v560 = vpop.f32.mrf.mxu0
        %v561 = vadd.f32 %v481, %v560
        %v562 = vpop.f32.mrf.mxu0
        %v563 = vadd.f32 %v483, %v562
        %564 = vdwg.mxu0
        %s565 = scalar_lea.vmem %s1, 4
        %v566 = vld [vmem:[%s565] sm:$0x3]
        %v567 = vld [vmem:[#allocation2] sm:$0x3f]
        %v568 = vsel %vm266, 1, 0
        %v569 = vsel %vm267, 1, 0
        %vm570 = vcmp.eq.s32.totalorder %v568, 1
        %vm571 = vcmp.eq.s32.totalorder %v569, 1
        %v573 = vcombine.high %v567, %v567
        %v575 = vunpack.c.l.s4 1983009808
        %v576 = vunpack.c.0.s8 %v575
        %v577 = vlaneseq
        %v578 = vshrl.u32 %v577, 7
        %v579 = vsub.s32 %v576, %v578
        %v580 = vrot.slane %v567, %v579
        %v582 = vunpack.c.l.s4 1983009808
        %v583 = vunpack.c.0.s8 %v582
        %v584 = vlaneseq
        %v585 = vshrl.u32 %v584, 7
        %v586 = vsub.s32 %v583, %v585
        %v587 = vrot.slane %v573, %v586
        %v588 = vcombine.high %v580, %v580
        %589 = vrot.lane.b32.xlu0 %v580, 15
        %v590 = vpop.permute.xlu0 %589
        %591 = vrot.lane.b32.xlu0 %v588, 15
        %v592 = vpop.permute.xlu0 %591
        %593 = vrot.lane.b32.xlu0 %v587, 15
        %v594 = vpop.permute.xlu0 %593
        %vm595 = vcmask 121856
        %v596 = vsel %vm595, %v590, %v592
        %v597 = vsel %vm595, %v592, %v594
        %v600 = vsel %vm570, %v596, 0.0
        %v601 = vsel %vm571, %v597, 0.0
        %v603 = vsel %vm280, %v566, 0
        %v606 = vsel %vm284, %v600, 0
        %v609 = vsel %vm284, %v601, 0
        %611 = vmatprep.subr.mxu0 0.0
        %612 = vmatpush1.msra.mxu0 0.0
        %613 = vmatprep.subr.mxu0 0.0
        %614 = vmatpush1.msra.mxu0 0.0
        %615 = vmatprep.subr.mxu0 0.0
        %616 = vmatpush1.msra.mxu0 0.0
        %617 = vmatprep.subr.mxu0 0.0
        %618 = vmatpush1.msra.mxu0 0.0
        %619 = vmatprep.subr.mxu0 0.0
        %620 = vmatpush1.msra.mxu0 0.0
        %621 = vmatprep.subr.mxu0 0.0
        %622 = vmatpush1.msra.mxu0 0.0
        %623 = vmatprep.subr.mxu0 0.0
        %624 = vmatpush1.msra.mxu0 0.0
        %625 = vmatprep.subr.mxu0 0.0
        %626 = vmatpush1.msra.mxu0 0.0
        %627 = vmatprep.subr.mxu0 0.0
        %628 = vmatpush1.msra.mxu0 0.0
        %629 = vmatprep.subr.mxu0 0.0
        %630 = vmatpush1.msra.mxu0 0.0
        %631 = vmatprep.subr.mxu0 0.0
        %632 = vmatpush1.msra.mxu0 0.0
        %633 = vmatprep.subr.mxu0 0.0
        %634 = vmatpush1.msra.mxu0 0.0
        %635 = vmatprep.subr.mxu0 0.0
        %636 = vmatpush1.msra.mxu0 0.0
        %637 = vmatprep.subr.mxu0 0.0
        %638 = vmatpush1.msra.mxu0 0.0
        %639 = vmatprep.subr.mxu0 0.0
        %640 = vmatpush1.msra.mxu0 0.0
        %641 = vmatprep.subr.mxu0 %v609
        %642 = vmatpush1.msra.mxu0 %v606
        %643 = vmatprep.subr.mxu0 0.0
        %644 = vmatpush2.msra.mxu0 0.0
        %645 = vmatprep.subr.mxu0 0.0
        %646 = vmatpush2.msra.mxu0 0.0
        %647 = vmatprep.subr.mxu0 0.0
        %648 = vmatpush2.msra.mxu0 0.0
        %649 = vmatprep.subr.mxu0 0.0
        %650 = vmatpush2.msra.mxu0 0.0
        %651 = vmatprep.subr.mxu0 0.0
        %652 = vmatpush2.msra.mxu0 0.0
        %653 = vmatprep.subr.mxu0 0.0
        %654 = vmatpush2.msra.mxu0 0.0
        %655 = vmatprep.subr.mxu0 0.0
        %656 = vmatpush2.msra.mxu0 0.0
        %657 = vmatprep.subr.mxu0 0.0
        %658 = vmatpush2.msra.mxu0 0.0
        %659 = vmatprep.subr.mxu0 0.0
        %660 = vmatpush2.msra.mxu0 0.0
        %661 = vmatprep.subr.mxu0 0.0
        %662 = vmatpush2.msra.mxu0 0.0
        %663 = vmatprep.subr.mxu0 0.0
        %664 = vmatpush2.msra.mxu0 0.0
        %665 = vmatprep.subr.mxu0 0.0
        %666 = vmatpush2.msra.mxu0 0.0
        %667 = vmatprep.subr.mxu0 0.0
        %668 = vmatpush2.msra.mxu0 0.0
        %669 = vmatprep.subr.mxu0 0.0
        %670 = vmatpush2.msra.mxu0 0.0
        %671 = vmatprep.subr.mxu0 0.0
        %672 = vmatpush2.msra.mxu0 0.0
        %673 = vmatprep.subr.mxu0 0.0
        %674 = vmatpush2.msra.mxu0 0.0
        %675 = vmatprep.mubr.f32.mxu0 0.0
        %676 = vmatmul.mubr.f32.gmra.mxu0 %v603
        %v677 = vpop.f32.mrf.mxu0
        %v678 = vadd.f32 0.0, %v677
        %v679 = vpop.f32.mrf.mxu0
        %v680 = vadd.f32 0.0, %v679
        %681 = vdwg.mxu0
        %v682 = vadd.f32 %v561, %v678
        %v683 = vadd.f32 %v563, %v680
        %s684 = scalar_lea.vmem %s1, 6
        %v685 = vld [vmem:[%s684] sm:$0x3]
        %v686 = vld [vmem:[#allocation2] sm:$0x3f]
        %v688 = vcombine.high %v686, %v686
        %v690 = vunpack.c.l.s4 1983009808
        %v691 = vunpack.c.0.s8 %v690
        %v692 = vlaneseq
        %v693 = vshrl.u32 %v692, 7
        %v694 = vsub.s32 %v691, %v693
        %v695 = vrot.slane %v686, %v694
        %v697 = vunpack.c.l.s4 1983009808
        %v698 = vunpack.c.0.s8 %v697
        %v699 = vlaneseq
        %v700 = vshrl.u32 %v699, 7
        %v701 = vsub.s32 %v698, %v700
        %v702 = vrot.slane %v688, %v701
        %v703 = vcombine.high %v695, %v695
        %704 = vrot.lane.b32.xlu0 %v695, 1
        %v705 = vpop.permute.xlu0 %704
        %706 = vrot.lane.b32.xlu0 %v703, 1
        %v707 = vpop.permute.xlu0 %706
        %708 = vrot.lane.b32.xlu0 %v702, 1
        %v709 = vpop.permute.xlu0 %708
        %vm710 = vcmask 7168
        %v711 = vsel %vm710, %v705, %v707
        %v712 = vsel %vm710, %v707, %v709
        %v715 = vsel %vm364, %v711, 0.0
        %v716 = vsel %vm365, %v712, 0.0
        %v718 = vsel %vm280, %v685, 0
        %v721 = vsel %vm284, %v715, 0
        %v724 = vsel %vm284, %v716, 0
        %726 = vmatprep.subr.mxu0 0.0
        %727 = vmatpush1.msra.mxu0 0.0
        %728 = vmatprep.subr.mxu0 0.0
        %729 = vmatpush1.msra.mxu0 0.0
        %730 = vmatprep.subr.mxu0 0.0
        %731 = vmatpush1.msra.mxu0 0.0
        %732 = vmatprep.subr.mxu0 0.0
        %733 = vmatpush1.msra.mxu0 0.0
        %734 = vmatprep.subr.mxu0 0.0
        %735 = vmatpush1.msra.mxu0 0.0
        %736 = vmatprep.subr.mxu0 0.0
        %737 = vmatpush1.msra.mxu0 0.0
        %738 = vmatprep.subr.mxu0 0.0
        %739 = vmatpush1.msra.mxu0 0.0
        %740 = vmatprep.subr.mxu0 0.0
        %741 = vmatpush1.msra.mxu0 0.0
        %742 = vmatprep.subr.mxu0 0.0
        %743 = vmatpush1.msra.mxu0 0.0
        %744 = vmatprep.subr.mxu0 0.0
        %745 = vmatpush1.msra.mxu0 0.0
        %746 = vmatprep.subr.mxu0 0.0
        %747 = vmatpush1.msra.mxu0 0.0
        %748 = vmatprep.subr.mxu0 0.0
        %749 = vmatpush1.msra.mxu0 0.0
        %750 = vmatprep.subr.mxu0 0.0
        %751 = vmatpush1.msra.mxu0 0.0
        %752 = vmatprep.subr.mxu0 0.0
        %753 = vmatpush1.msra.mxu0 0.0
        %754 = vmatprep.subr.mxu0 0.0
        %755 = vmatpush1.msra.mxu0 0.0
        %756 = vmatprep.subr.mxu0 %v724
        %757 = vmatpush1.msra.mxu0 %v721
        %758 = vmatprep.subr.mxu0 0.0
        %759 = vmatpush2.msra.mxu0 0.0
        %760 = vmatprep.subr.mxu0 0.0
        %761 = vmatpush2.msra.mxu0 0.0
        %762 = vmatprep.subr.mxu0 0.0
        %763 = vmatpush2.msra.mxu0 0.0
        %764 = vmatprep.subr.mxu0 0.0
        %765 = vmatpush2.msra.mxu0 0.0
        %766 = vmatprep.subr.mxu0 0.0
        %767 = vmatpush2.msra.mxu0 0.0
        %768 = vmatprep.subr.mxu0 0.0
        %769 = vmatpush2.msra.mxu0 0.0
        %770 = vmatprep.subr.mxu0 0.0
        %771 = vmatpush2.msra.mxu0 0.0
        %772 = vmatprep.subr.mxu0 0.0
        %773 = vmatpush2.msra.mxu0 0.0
        %774 = vmatprep.subr.mxu0 0.0
        %775 = vmatpush2.msra.mxu0 0.0
        %776 = vmatprep.subr.mxu0 0.0
        %777 = vmatpush2.msra.mxu0 0.0
        %778 = vmatprep.subr.mxu0 0.0
        %779 = vmatpush2.msra.mxu0 0.0
        %780 = vmatprep.subr.mxu0 0.0
        %781 = vmatpush2.msra.mxu0 0.0
        %782 = vmatprep.subr.mxu0 0.0
        %783 = vmatpush2.msra.mxu0 0.0
        %784 = vmatprep.subr.mxu0 0.0
        %785 = vmatpush2.msra.mxu0 0.0
        %786 = vmatprep.subr.mxu0 0.0
        %787 = vmatpush2.msra.mxu0 0.0
        %788 = vmatprep.subr.mxu0 0.0
        %789 = vmatpush2.msra.mxu0 0.0
        %790 = vmatprep.mubr.f32.mxu0 0.0
        %791 = vmatmul.mubr.f32.gmra.mxu0 %v718
        %v792 = vpop.f32.mrf.mxu0
        %v793 = vadd.f32 0.0, %v792
        %v794 = vpop.f32.mrf.mxu0
        %v795 = vadd.f32 0.0, %v794
        %796 = vdwg.mxu0
        %v797 = vadd.f32 %v682, %v793
        %v798 = vadd.f32 %v683, %v795
        %s799 = scalar_lea.vmem %s1, 8
        %v800 = vld [vmem:[%s799] sm:$0x3]
        %v801 = vld [vmem:[#allocation2 + $0x2] sm:$0xf]
        %v804 = vunpack.c.l.s4 1983009808
        %v805 = vunpack.c.0.s8 %v804
        %v806 = vlaneseq
        %v807 = vshrl.u32 %v806, 7
        %v808 = vsub.s32 %v805, %v807
        %v809 = vrot.slane %v801, %v808
        %v810 = vcombine.high %v809, %v809
        %v812 = vsel %vm280, %v800, 0
        %v814 = vsel %vm284, %v809, 0
        %v816 = vsel %vm284, %v810, 0
        %818 = vmatprep.subr.mxu0 0.0
        %819 = vmatpush1.msra.mxu0 0.0
        %820 = vmatprep.subr.mxu0 0.0
        %821 = vmatpush1.msra.mxu0 0.0
        %822 = vmatprep.subr.mxu0 0.0
        %823 = vmatpush1.msra.mxu0 0.0
        %824 = vmatprep.subr.mxu0 0.0
        %825 = vmatpush1.msra.mxu0 0.0
        %826 = vmatprep.subr.mxu0 0.0
        %827 = vmatpush1.msra.mxu0 0.0
        %828 = vmatprep.subr.mxu0 0.0
        %829 = vmatpush1.msra.mxu0 0.0
        %830 = vmatprep.subr.mxu0 0.0
        %831 = vmatpush1.msra.mxu0 0.0
        %832 = vmatprep.subr.mxu0 0.0
        %833 = vmatpush1.msra.mxu0 0.0
        %834 = vmatprep.subr.mxu0 0.0
        %835 = vmatpush1.msra.mxu0 0.0
        %836 = vmatprep.subr.mxu0 0.0
        %837 = vmatpush1.msra.mxu0 0.0
        %838 = vmatprep.subr.mxu0 0.0
        %839 = vmatpush1.msra.mxu0 0.0
        %840 = vmatprep.subr.mxu0 0.0
        %841 = vmatpush1.msra.mxu0 0.0
        %842 = vmatprep.subr.mxu0 0.0
        %843 = vmatpush1.msra.mxu0 0.0
        %844 = vmatprep.subr.mxu0 0.0
        %845 = vmatpush1.msra.mxu0 0.0
        %846 = vmatprep.subr.mxu0 0.0
        %847 = vmatpush1.msra.mxu0 0.0
        %848 = vmatprep.subr.mxu0 %v816
        %849 = vmatpush1.msra.mxu0 %v814
        %850 = vmatprep.subr.mxu0 0.0
        %851 = vmatpush2.msra.mxu0 0.0
        %852 = vmatprep.subr.mxu0 0.0
        %853 = vmatpush2.msra.mxu0 0.0
        %854 = vmatprep.subr.mxu0 0.0
        %855 = vmatpush2.msra.mxu0 0.0
        %856 = vmatprep.subr.mxu0 0.0
        %857 = vmatpush2.msra.mxu0 0.0
        %858 = vmatprep.subr.mxu0 0.0
        %859 = vmatpush2.msra.mxu0 0.0
        %860 = vmatprep.subr.mxu0 0.0
        %861 = vmatpush2.msra.mxu0 0.0
        %862 = vmatprep.subr.mxu0 0.0
        %863 = vmatpush2.msra.mxu0 0.0
        %864 = vmatprep.subr.mxu0 0.0
        %865 = vmatpush2.msra.mxu0 0.0
        %866 = vmatprep.subr.mxu0 0.0
        %867 = vmatpush2.msra.mxu0 0.0
        %868 = vmatprep.subr.mxu0 0.0
        %869 = vmatpush2.msra.mxu0 0.0
        %870 = vmatprep.subr.mxu0 0.0
        %871 = vmatpush2.msra.mxu0 0.0
        %872 = vmatprep.subr.mxu0 0.0
        %873 = vmatpush2.msra.mxu0 0.0
        %874 = vmatprep.subr.mxu0 0.0
        %875 = vmatpush2.msra.mxu0 0.0
        %876 = vmatprep.subr.mxu0 0.0
        %877 = vmatpush2.msra.mxu0 0.0
        %878 = vmatprep.subr.mxu0 0.0
        %879 = vmatpush2.msra.mxu0 0.0
        %880 = vmatprep.subr.mxu0 0.0
        %881 = vmatpush2.msra.mxu0 0.0
        %882 = vmatprep.mubr.f32.mxu0 0.0
        %883 = vmatmul.mubr.f32.gmra.mxu0 %v812
        %v884 = vpop.f32.mrf.mxu0
        %v885 = vadd.f32 0.0, %v884
        %v886 = vpop.f32.mrf.mxu0
        %v887 = vadd.f32 0.0, %v886
        %888 = vdwg.mxu0
        %v889 = vadd.f32 %v797, %v885
        %v890 = vadd.f32 %v798, %v887
        %s891 = scalar_lea.vmem %s1, 10
        %v892 = vld [vmem:[%s891] sm:$0x3]
        %v893 = vld [vmem:[#allocation2 + $0x2] sm:$0x3f]
        %v895 = vcombine.high %v893, %v893
        %v897 = vunpack.c.l.s4 1983009808
        %v898 = vunpack.c.0.s8 %v897
        %v899 = vlaneseq
        %v900 = vshrl.u32 %v899, 7
        %v901 = vsub.s32 %v898, %v900
        %v902 = vrot.slane %v893, %v901
        %v904 = vunpack.c.l.s4 1983009808
        %v905 = vunpack.c.0.s8 %v904
        %v906 = vlaneseq
        %v907 = vshrl.u32 %v906, 7
        %v908 = vsub.s32 %v905, %v907
        %v909 = vrot.slane %v895, %v908
        %v910 = vcombine.high %v902, %v902
        %911 = vrot.lane.b32.xlu0 %v902, 127
        %v912 = vpop.permute.xlu0 %911
        %913 = vrot.lane.b32.xlu0 %v910, 127
        %v914 = vpop.permute.xlu0 %913
        %915 = vrot.lane.b32.xlu0 %v909, 127
        %v916 = vpop.permute.xlu0 %915
        %vm917 = vcmask 1039360
        %v918 = vsel %vm917, %v912, %v914
        %v919 = vsel %vm917, %v914, %v916
        %v922 = vsel %vm570, %v918, 0.0
        %v923 = vsel %vm571, %v919, 0.0
        %v925 = vsel %vm280, %v892, 0
        %v928 = vsel %vm284, %v922, 0
        %v931 = vsel %vm284, %v923, 0
        %933 = vmatprep.subr.mxu0 0.0
        %934 = vmatpush1.msra.mxu0 0.0
        %935 = vmatprep.subr.mxu0 0.0
        %936 = vmatpush1.msra.mxu0 0.0
        %937 = vmatprep.subr.mxu0 0.0
        %938 = vmatpush1.msra.mxu0 0.0
        %939 = vmatprep.subr.mxu0 0.0
        %940 = vmatpush1.msra.mxu0 0.0
        %941 = vmatprep.subr.mxu0 0.0
        %942 = vmatpush1.msra.mxu0 0.0
        %943 = vmatprep.subr.mxu0 0.0
        %944 = vmatpush1.msra.mxu0 0.0
        %945 = vmatprep.subr.mxu0 0.0
        %946 = vmatpush1.msra.mxu0 0.0
        %947 = vmatprep.subr.mxu0 0.0
        %948 = vmatpush1.msra.mxu0 0.0
        %949 = vmatprep.subr.mxu0 0.0
        %950 = vmatpush1.msra.mxu0 0.0
        %951 = vmatprep.subr.mxu0 0.0
        %952 = vmatpush1.msra.mxu0 0.0
        %953 = vmatprep.subr.mxu0 0.0
        %954 = vmatpush1.msra.mxu0 0.0
        %955 = vmatprep.subr.mxu0 0.0
        %956 = vmatpush1.msra.mxu0 0.0
        %957 = vmatprep.subr.mxu0 0.0
        %958 = vmatpush1.msra.mxu0 0.0
        %959 = vmatprep.subr.mxu0 0.0
        %960 = vmatpush1.msra.mxu0 0.0
        %961 = vmatprep.subr.mxu0 0.0
        %962 = vmatpush1.msra.mxu0 0.0
        %963 = vmatprep.subr.mxu0 %v931
        %964 = vmatpush1.msra.mxu0 %v928
        %965 = vmatprep.subr.mxu0 0.0
        %966 = vmatpush2.msra.mxu0 0.0
        %967 = vmatprep.subr.mxu0 0.0
        %968 = vmatpush2.msra.mxu0 0.0
        %969 = vmatprep.subr.mxu0 0.0
        %970 = vmatpush2.msra.mxu0 0.0
        %971 = vmatprep.subr.mxu0 0.0
        %972 = vmatpush2.msra.mxu0 0.0
        %973 = vmatprep.subr.mxu0 0.0
        %974 = vmatpush2.msra.mxu0 0.0
        %975 = vmatprep.subr.mxu0 0.0
        %976 = vmatpush2.msra.mxu0 0.0
        %977 = vmatprep.subr.mxu0 0.0
        %978 = vmatpush2.msra.mxu0 0.0
        %979 = vmatprep.subr.mxu0 0.0
        %980 = vmatpush2.msra.mxu0 0.0
        %981 = vmatprep.subr.mxu0 0.0
        %982 = vmatpush2.msra.mxu0 0.0
        %983 = vmatprep.subr.mxu0 0.0
        %984 = vmatpush2.msra.mxu0 0.0
        %985 = vmatprep.subr.mxu0 0.0
        %986 = vmatpush2.msra.mxu0 0.0
        %987 = vmatprep.subr.mxu0 0.0
        %988 = vmatpush2.msra.mxu0 0.0
        %989 = vmatprep.subr.mxu0 0.0
        %990 = vmatpush2.msra.mxu0 0.0
        %991 = vmatprep.subr.mxu0 0.0
        %992 = vmatpush2.msra.mxu0 0.0
        %993 = vmatprep.subr.mxu0 0.0
        %994 = vmatpush2.msra.mxu0 0.0
        %995 = vmatprep.subr.mxu0 0.0
        %996 = vmatpush2.msra.mxu0 0.0
        %997 = vmatprep.mubr.f32.mxu0 0.0
        %998 = vmatmul.mubr.f32.gmra.mxu0 %v925
        %v999 = vpop.f32.mrf.mxu0
        %v1000 = vadd.f32 0.0, %v999
        %v1001 = vpop.f32.mrf.mxu0
        %v1002 = vadd.f32 0.0, %v1001
        %1003 = vdwg.mxu0
        %v1004 = vadd.f32 %v889, %v1000
        %v1005 = vadd.f32 %v890, %v1002
        %s1006 = scalar_lea.vmem %s1, 12
        %v1007 = vld [vmem:[%s1006] sm:$0x3]
        %v1008 = vld [vmem:[#allocation2 + $0x2] sm:$0x3f]
        %v1010 = vcombine.high %v1008, %v1008
        %v1012 = vunpack.c.l.s4 1983009808
        %v1013 = vunpack.c.0.s8 %v1012
        %v1014 = vlaneseq
        %v1015 = vshrl.u32 %v1014, 7
        %v1016 = vsub.s32 %v1013, %v1015
        %v1017 = vrot.slane %v1008, %v1016
        %v1019 = vunpack.c.l.s4 1983009808
        %v1020 = vunpack.c.0.s8 %v1019
        %v1021 = vlaneseq
        %v1022 = vshrl.u32 %v1021, 7
        %v1023 = vsub.s32 %v1020, %v1022
        %v1024 = vrot.slane %v1010, %v1023
        %v1025 = vcombine.high %v1017, %v1017
        %1026 = vrot.lane.b32.xlu0 %v1017, 113
        %v1027 = vpop.permute.xlu0 %1026
        %1028 = vrot.lane.b32.xlu0 %v1025, 113
        %v1029 = vpop.permute.xlu0 %1028
        %1030 = vrot.lane.b32.xlu0 %v1024, 113
        %v1031 = vpop.permute.xlu0 %1030
        %vm1032 = vcmask 924672
        %v1033 = vsel %vm1032, %v1027, %v1029
        %v1034 = vsel %vm1032, %v1029, %v1031
        %v1037 = vsel %vm364, %v1033, 0.0
        %v1038 = vsel %vm365, %v1034, 0.0
        %v1040 = vsel %vm280, %v1007, 0
        %v1043 = vsel %vm284, %v1037, 0
        %v1046 = vsel %vm284, %v1038, 0
        %1048 = vmatprep.subr.mxu0 0.0
        %1049 = vmatpush1.msra.mxu0 0.0
        %1050 = vmatprep.subr.mxu0 0.0
        %1051 = vmatpush1.msra.mxu0 0.0
        %1052 = vmatprep.subr.mxu0 0.0
        %1053 = vmatpush1.msra.mxu0 0.0
        %1054 = vmatprep.subr.mxu0 0.0
        %1055 = vmatpush1.msra.mxu0 0.0
        %1056 = vmatprep.subr.mxu0 0.0
        %1057 = vmatpush1.msra.mxu0 0.0
        %1058 = vmatprep.subr.mxu0 0.0
        %1059 = vmatpush1.msra.mxu0 0.0
        %1060 = vmatprep.subr.mxu0 0.0
        %1061 = vmatpush1.msra.mxu0 0.0
        %1062 = vmatprep.subr.mxu0 0.0
        %1063 = vmatpush1.msra.mxu0 0.0
        %1064 = vmatprep.subr.mxu0 0.0
        %1065 = vmatpush1.msra.mxu0 0.0
        %1066 = vmatprep.subr.mxu0 0.0
        %1067 = vmatpush1.msra.mxu0 0.0
        %1068 = vmatprep.subr.mxu0 0.0
        %1069 = vmatpush1.msra.mxu0 0.0
        %1070 = vmatprep.subr.mxu0 0.0
        %1071 = vmatpush1.msra.mxu0 0.0
        %1072 = vmatprep.subr.mxu0 0.0
        %1073 = vmatpush1.msra.mxu0 0.0
        %1074 = vmatprep.subr.mxu0 0.0
        %1075 = vmatpush1.msra.mxu0 0.0
        %1076 = vmatprep.subr.mxu0 0.0
        %1077 = vmatpush1.msra.mxu0 0.0
        %1078 = vmatprep.subr.mxu0 %v1046
        %1079 = vmatpush1.msra.mxu0 %v1043
        %1080 = vmatprep.subr.mxu0 0.0
        %1081 = vmatpush2.msra.mxu0 0.0
        %1082 = vmatprep.subr.mxu0 0.0
        %1083 = vmatpush2.msra.mxu0 0.0
        %1084 = vmatprep.subr.mxu0 0.0
        %1085 = vmatpush2.msra.mxu0 0.0
        %1086 = vmatprep.subr.mxu0 0.0
        %1087 = vmatpush2.msra.mxu0 0.0
        %1088 = vmatprep.subr.mxu0 0.0
        %1089 = vmatpush2.msra.mxu0 0.0
        %1090 = vmatprep.subr.mxu0 0.0
        %1091 = vmatpush2.msra.mxu0 0.0
        %1092 = vmatprep.subr.mxu0 0.0
        %1093 = vmatpush2.msra.mxu0 0.0
        %1094 = vmatprep.subr.mxu0 0.0
        %1095 = vmatpush2.msra.mxu0 0.0
        %1096 = vmatprep.subr.mxu0 0.0
        %1097 = vmatpush2.msra.mxu0 0.0
        %1098 = vmatprep.subr.mxu0 0.0
        %1099 = vmatpush2.msra.mxu0 0.0
        %1100 = vmatprep.subr.mxu0 0.0
        %1101 = vmatpush2.msra.mxu0 0.0
        %1102 = vmatprep.subr.mxu0 0.0
        %1103 = vmatpush2.msra.mxu0 0.0
        %1104 = vmatprep.subr.mxu0 0.0
        %1105 = vmatpush2.msra.mxu0 0.0
        %1106 = vmatprep.subr.mxu0 0.0
        %1107 = vmatpush2.msra.mxu0 0.0
        %1108 = vmatprep.subr.mxu0 0.0
        %1109 = vmatpush2.msra.mxu0 0.0
        %1110 = vmatprep.subr.mxu0 0.0
        %1111 = vmatpush2.msra.mxu0 0.0
        %1112 = vmatprep.mubr.f32.mxu0 0.0
        %1113 = vmatmul.mubr.f32.gmra.mxu0 %v1040
        %v1114 = vpop.f32.mrf.mxu0
        %v1115 = vadd.f32 0.0, %v1114
        %v1116 = vpop.f32.mrf.mxu0
        %v1117 = vadd.f32 0.0, %v1116
        %1118 = vdwg.mxu0
        %v1119 = vadd.f32 %v1004, %v1115
        %v1120 = vadd.f32 %v1005, %v1117
        %s1121 = scalar_lea.vmem %s1, 14
        %v1122 = vld [vmem:[%s1121] sm:$0x3]
        %v1123 = vld [vmem:[#allocation2 + $0x2] sm:$0x3f]
        %v1125 = vcombine.high %v1123, %v1123
        %v1127 = vunpack.c.l.s4 1983009808
        %v1128 = vunpack.c.0.s8 %v1127
        %v1129 = vlaneseq
        %v1130 = vshrl.u32 %v1129, 7
        %v1131 = vsub.s32 %v1128, %v1130
        %v1132 = vrot.slane %v1123, %v1131
        %v1134 = vunpack.c.l.s4 1983009808
        %v1135 = vunpack.c.0.s8 %v1134
        %v1136 = vlaneseq
        %v1137 = vshrl.u32 %v1136, 7
        %v1138 = vsub.s32 %v1135, %v1137
        %v1139 = vrot.slane %v1125, %v1138
        %v1140 = vcombine.high %v1132, %v1132
        %1141 = vrot.lane.b32.xlu0 %v1132, 112
        %v1142 = vpop.permute.xlu0 %1141
        %1143 = vrot.lane.b32.xlu0 %v1140, 112
        %v1144 = vpop.permute.xlu0 %1143
        %1145 = vrot.lane.b32.xlu0 %v1139, 112
        %v1146 = vpop.permute.xlu0 %1145
        %vm1147 = vcmask 916480
        %v1148 = vsel %vm1147, %v1142, %v1144
        %v1149 = vsel %vm1147, %v1144, %v1146
        %v1151 = vsel %vm280, %v1122, 0
        %v1153 = vsel %vm284, %v1148, 0
        %v1155 = vsel %vm284, %v1149, 0
        %1157 = vmatprep.subr.mxu0 0.0
        %1158 = vmatpush1.msra.mxu0 0.0
        %1159 = vmatprep.subr.mxu0 0.0
        %1160 = vmatpush1.msra.mxu0 0.0
        %1161 = vmatprep.subr.mxu0 0.0
        %1162 = vmatpush1.msra.mxu0 0.0
        %1163 = vmatprep.subr.mxu0 0.0
        %1164 = vmatpush1.msra.mxu0 0.0
        %1165 = vmatprep.subr.mxu0 0.0
        %1166 = vmatpush1.msra.mxu0 0.0
        %1167 = vmatprep.subr.mxu0 0.0
        %1168 = vmatpush1.msra.mxu0 0.0
        %1169 = vmatprep.subr.mxu0 0.0
        %1170 = vmatpush1.msra.mxu0 0.0
        %1171 = vmatprep.subr.mxu0 0.0
        %1172 = vmatpush1.msra.mxu0 0.0
        %1173 = vmatprep.subr.mxu0 0.0
        %1174 = vmatpush1.msra.mxu0 0.0
        %1175 = vmatprep.subr.mxu0 0.0
        %1176 = vmatpush1.msra.mxu0 0.0
        %1177 = vmatprep.subr.mxu0 0.0
        %1178 = vmatpush1.msra.mxu0 0.0
        %1179 = vmatprep.subr.mxu0 0.0
        %1180 = vmatpush1.msra.mxu0 0.0
        %1181 = vmatprep.subr.mxu0 0.0
        %1182 = vmatpush1.msra.mxu0 0.0
        %1183 = vmatprep.subr.mxu0 0.0
        %1184 = vmatpush1.msra.mxu0 0.0
        %1185 = vmatprep.subr.mxu0 0.0
        %1186 = vmatpush1.msra.mxu0 0.0
        %1187 = vmatprep.subr.mxu0 %v1155
        %1188 = vmatpush1.msra.mxu0 %v1153
        %1189 = vmatprep.subr.mxu0 0.0
        %1190 = vmatpush2.msra.mxu0 0.0
        %1191 = vmatprep.subr.mxu0 0.0
        %1192 = vmatpush2.msra.mxu0 0.0
        %1193 = vmatprep.subr.mxu0 0.0
        %1194 = vmatpush2.msra.mxu0 0.0
        %1195 = vmatprep.subr.mxu0 0.0
        %1196 = vmatpush2.msra.mxu0 0.0
        %1197 = vmatprep.subr.mxu0 0.0
        %1198 = vmatpush2.msra.mxu0 0.0
        %1199 = vmatprep.subr.mxu0 0.0
        %1200 = vmatpush2.msra.mxu0 0.0
        %1201 = vmatprep.subr.mxu0 0.0
        %1202 = vmatpush2.msra.mxu0 0.0
        %1203 = vmatprep.subr.mxu0 0.0
        %1204 = vmatpush2.msra.mxu0 0.0
        %1205 = vmatprep.subr.mxu0 0.0
        %1206 = vmatpush2.msra.mxu0 0.0
        %1207 = vmatprep.subr.mxu0 0.0
        %1208 = vmatpush2.msra.mxu0 0.0
        %1209 = vmatprep.subr.mxu0 0.0
        %1210 = vmatpush2.msra.mxu0 0.0
        %1211 = vmatprep.subr.mxu0 0.0
        %1212 = vmatpush2.msra.mxu0 0.0
        %1213 = vmatprep.subr.mxu0 0.0
        %1214 = vmatpush2.msra.mxu0 0.0
        %1215 = vmatprep.subr.mxu0 0.0
        %1216 = vmatpush2.msra.mxu0 0.0
        %1217 = vmatprep.subr.mxu0 0.0
        %1218 = vmatpush2.msra.mxu0 0.0
        %1219 = vmatprep.subr.mxu0 0.0
        %1220 = vmatpush2.msra.mxu0 0.0
        %1221 = vmatprep.mubr.f32.mxu0 0.0
        %1222 = vmatmul.mubr.f32.gmra.mxu0 %v1151
        %v1223 = vpop.f32.mrf.mxu0
        %v1224 = vadd.f32 0.0, %v1223
        %v1225 = vpop.f32.mrf.mxu0
        %v1226 = vadd.f32 0.0, %v1225
        %1227 = vdwg.mxu0
        %v1228 = vadd.f32 %v1119, %v1224
        %v1229 = vadd.f32 %v1120, %v1226
        %s1230 = scalar_lea.vmem %s1, 16
        %v1231 = vld [vmem:[%s1230] sm:$0x3]
        %v1232 = vld [vmem:[#allocation2 + $0x2] sm:$0x3f]
        %v1234 = vcombine.high %v1232, %v1232
        %v1236 = vunpack.c.l.s4 1983009808
        %v1237 = vunpack.c.0.s8 %v1236
        %v1238 = vlaneseq
        %v1239 = vshrl.u32 %v1238, 7
        %v1240 = vsub.s32 %v1237, %v1239
        %v1241 = vrot.slane %v1232, %v1240
        %v1243 = vunpack.c.l.s4 1983009808
        %v1244 = vunpack.c.0.s8 %v1243
        %v1245 = vlaneseq
        %v1246 = vshrl.u32 %v1245, 7
        %v1247 = vsub.s32 %v1244, %v1246
        %v1248 = vrot.slane %v1234, %v1247
        %v1249 = vcombine.high %v1241, %v1241
        %1250 = vrot.lane.b32.xlu0 %v1241, 111
        %v1251 = vpop.permute.xlu0 %1250
        %1252 = vrot.lane.b32.xlu0 %v1249, 111
        %v1253 = vpop.permute.xlu0 %1252
        %1254 = vrot.lane.b32.xlu0 %v1248, 111
        %v1255 = vpop.permute.xlu0 %1254
        %vm1256 = vcmask 908288
        %v1257 = vsel %vm1256, %v1251, %v1253
        %v1258 = vsel %vm1256, %v1253, %v1255
        %v1261 = vsel %vm570, %v1257, 0.0
        %v1262 = vsel %vm571, %v1258, 0.0
        %v1264 = vsel %vm280, %v1231, 0
        %v1267 = vsel %vm284, %v1261, 0
        %v1270 = vsel %vm284, %v1262, 0
        %1272 = vmatprep.subr.mxu0 0.0
        %1273 = vmatpush1.msra.mxu0 0.0
        %1274 = vmatprep.subr.mxu0 0.0
        %1275 = vmatpush1.msra.mxu0 0.0
        %1276 = vmatprep.subr.mxu0 0.0
        %1277 = vmatpush1.msra.mxu0 0.0
        %1278 = vmatprep.subr.mxu0 0.0
        %1279 = vmatpush1.msra.mxu0 0.0
        %1280 = vmatprep.subr.mxu0 0.0
        %1281 = vmatpush1.msra.mxu0 0.0
        %1282 = vmatprep.subr.mxu0 0.0
        %1283 = vmatpush1.msra.mxu0 0.0
        %1284 = vmatprep.subr.mxu0 0.0
        %1285 = vmatpush1.msra.mxu0 0.0
        %1286 = vmatprep.subr.mxu0 0.0
        %1287 = vmatpush1.msra.mxu0 0.0
        %1288 = vmatprep.subr.mxu0 0.0
        %1289 = vmatpush1.msra.mxu0 0.0
        %1290 = vmatprep.subr.mxu0 0.0
        %1291 = vmatpush1.msra.mxu0 0.0
        %1292 = vmatprep.subr.mxu0 0.0
        %1293 = vmatpush1.msra.mxu0 0.0
        %1294 = vmatprep.subr.mxu0 0.0
        %1295 = vmatpush1.msra.mxu0 0.0
        %1296 = vmatprep.subr.mxu0 0.0
        %1297 = vmatpush1.msra.mxu0 0.0
        %1298 = vmatprep.subr.mxu0 0.0
        %1299 = vmatpush1.msra.mxu0 0.0
        %1300 = vmatprep.subr.mxu0 0.0
        %1301 = vmatpush1.msra.mxu0 0.0
        %1302 = vmatprep.subr.mxu0 %v1270
        %1303 = vmatpush1.msra.mxu0 %v1267
        %1304 = vmatprep.subr.mxu0 0.0
        %1305 = vmatpush2.msra.mxu0 0.0
        %1306 = vmatprep.subr.mxu0 0.0
        %1307 = vmatpush2.msra.mxu0 0.0
        %1308 = vmatprep.subr.mxu0 0.0
        %1309 = vmatpush2.msra.mxu0 0.0
        %1310 = vmatprep.subr.mxu0 0.0
        %1311 = vmatpush2.msra.mxu0 0.0
        %1312 = vmatprep.subr.mxu0 0.0
        %1313 = vmatpush2.msra.mxu0 0.0
        %1314 = vmatprep.subr.mxu0 0.0
        %1315 = vmatpush2.msra.mxu0 0.0
        %1316 = vmatprep.subr.mxu0 0.0
        %1317 = vmatpush2.msra.mxu0 0.0
        %1318 = vmatprep.subr.mxu0 0.0
        %1319 = vmatpush2.msra.mxu0 0.0
        %1320 = vmatprep.subr.mxu0 0.0
        %1321 = vmatpush2.msra.mxu0 0.0
        %1322 = vmatprep.subr.mxu0 0.0
        %1323 = vmatpush2.msra.mxu0 0.0
        %1324 = vmatprep.subr.mxu0 0.0
        %1325 = vmatpush2.msra.mxu0 0.0
        %1326 = vmatprep.subr.mxu0 0.0
        %1327 = vmatpush2.msra.mxu0 0.0
        %1328 = vmatprep.subr.mxu0 0.0
        %1329 = vmatpush2.msra.mxu0 0.0
        %1330 = vmatprep.subr.mxu0 0.0
        %1331 = vmatpush2.msra.mxu0 0.0
        %1332 = vmatprep.subr.mxu0 0.0
        %1333 = vmatpush2.msra.mxu0 0.0
        %1334 = vmatprep.subr.mxu0 0.0
        %1335 = vmatpush2.msra.mxu0 0.0
        %1336 = vmatprep.mubr.f32.mxu0 0.0
        %1337 = vmatmul.mubr.f32.gmra.mxu0 %v1264
        %v1338 = vpop.f32.mrf.mxu0
        %v1339 = vadd.f32 0.0, %v1338
        %v1340 = vpop.f32.mrf.mxu0
        %v1341 = vadd.f32 0.0, %v1340
        %1342 = vdwg.mxu0
        %v1343 = vadd.f32 %v1228, %v1339
        %v1344 = vadd.f32 %v1229, %v1341
        %v1345 = vld [vmem:[%s2] sm:$0xff]
        %v1347 = vsel %vm280, %v1345, 0
        %v1350 = vsel %vm284, %v1343, 0
        %v1353 = vsel %vm284, %v1344, 0
        %1355 = vmatprep.subr.mxu0 0.0
        %1356 = vmatpush1.msra.mxu0 0.0
        %1357 = vmatprep.subr.mxu0 0.0
        %1358 = vmatpush1.msra.mxu0 0.0
        %1359 = vmatprep.subr.mxu0 0.0
        %1360 = vmatpush1.msra.mxu0 0.0
        %1361 = vmatprep.subr.mxu0 0.0
        %1362 = vmatpush1.msra.mxu0 0.0
        %1363 = vmatprep.subr.mxu0 0.0
        %1364 = vmatpush1.msra.mxu0 0.0
        %1365 = vmatprep.subr.mxu0 0.0
        %1366 = vmatpush1.msra.mxu0 0.0
        %1367 = vmatprep.subr.mxu0 0.0
        %1368 = vmatpush1.msra.mxu0 0.0
        %1369 = vmatprep.subr.mxu0 0.0
        %1370 = vmatpush1.msra.mxu0 0.0
        %1371 = vmatprep.subr.mxu0 0.0
        %1372 = vmatpush1.msra.mxu0 0.0
        %1373 = vmatprep.subr.mxu0 0.0
        %1374 = vmatpush1.msra.mxu0 0.0
        %1375 = vmatprep.subr.mxu0 0.0
        %1376 = vmatpush1.msra.mxu0 0.0
        %1377 = vmatprep.subr.mxu0 0.0
        %1378 = vmatpush1.msra.mxu0 0.0
        %1379 = vmatprep.subr.mxu0 0.0
        %1380 = vmatpush1.msra.mxu0 0.0
        %1381 = vmatprep.subr.mxu0 0.0
        %1382 = vmatpush1.msra.mxu0 0.0
        %1383 = vmatprep.subr.mxu0 0.0
        %1384 = vmatpush1.msra.mxu0 0.0
        %1385 = vmatprep.subr.mxu0 %v1353
        %1386 = vmatpush1.msra.mxu0 %v1350
        %1387 = vmatprep.subr.mxu0 0.0
        %1388 = vmatpush2.msra.mxu0 0.0
        %1389 = vmatprep.subr.mxu0 0.0
        %1390 = vmatpush2.msra.mxu0 0.0
        %1391 = vmatprep.subr.mxu0 0.0
        %1392 = vmatpush2.msra.mxu0 0.0
        %1393 = vmatprep.subr.mxu0 0.0
        %1394 = vmatpush2.msra.mxu0 0.0
        %1395 = vmatprep.subr.mxu0 0.0
        %1396 = vmatpush2.msra.mxu0 0.0
        %1397 = vmatprep.subr.mxu0 0.0
        %1398 = vmatpush2.msra.mxu0 0.0
        %1399 = vmatprep.subr.mxu0 0.0
        %1400 = vmatpush2.msra.mxu0 0.0
        %1401 = vmatprep.subr.mxu0 0.0
        %1402 = vmatpush2.msra.mxu0 0.0
        %1403 = vmatprep.subr.mxu0 0.0
        %1404 = vmatpush2.msra.mxu0 0.0
        %1405 = vmatprep.subr.mxu0 0.0
        %1406 = vmatpush2.msra.mxu0 0.0
        %1407 = vmatprep.subr.mxu0 0.0
        %1408 = vmatpush2.msra.mxu0 0.0
        %1409 = vmatprep.subr.mxu0 0.0
        %1410 = vmatpush2.msra.mxu0 0.0
        %1411 = vmatprep.subr.mxu0 0.0
        %1412 = vmatpush2.msra.mxu0 0.0
        %1413 = vmatprep.subr.mxu0 0.0
        %1414 = vmatpush2.msra.mxu0 0.0
        %1415 = vmatprep.subr.mxu0 0.0
        %1416 = vmatpush2.msra.mxu0 0.0
        %1417 = vmatprep.subr.mxu0 0.0
        %1418 = vmatpush2.msra.mxu0 0.0
        %1419 = vmatprep.mubr.f32.mxu0 0.0
        %1420 = vmatmul.mubr.f32.gmra.mxu0 %v1347
        %v1421 = vpop.f32.mrf.mxu0
        %v1422 = vadd.f32 0.0, %v1421
        %v1423 = vpop.f32.mrf.mxu0
        %v1424 = vadd.f32 0.0, %v1423
        %1425 = vdwg.mxu0
        %v1426 = vadd.f32 %v356, %v1422
        %v1427 = vadd.f32 %v358, %v1424
        %1428 = vst [vmem:[%s217] sm:$0xff] %v1426
        %1429 = vst [vmem:[%s217 + $0x8] sm:$0xff] %v1427
        %s1430 = sand.u32 %s137, 1
        %s1431 = scalar_lea.sflag [#allocation4], %s1430
        %s1432 = sand.u32 %s137, 1
        %s1433 = smul.addr %s1432, 16
        %s1434 = scalar_lea.vmem [#allocation3], %s1433
        // Predicated region
        $region41: #{tpu_custom_call.1} parent=39 // pred_check
          %p1435 = pneg %p147
        $region42: #{tpu_custom_call.1} parent=39 // pred_check_branch
          %1437 = sbr.rel (%p1435) target = $region44
        $region43: #{tpu_custom_call.1} parent=39 // pred_region
          %s1439 = ssub.s32 256, 256
          %1440 = vsyncadd %s1431, %s1439
          %s1441 = smul.addr %s19, 2
          %s1442 = smul.addr %s1441, 128
          %s1443 = scalar_lea.hbm %s5, %s1442
          %s1445 = sshll.u32 %s1434, 4
          %s1446 = int_to_ptr.vmem [resolvable:$true] %s1445
          %1448 = dma.vmem_to_hbm [thread:$0]  %s1446, 256, %s1443, %s1431
        $region44: #{tpu_custom_call.1} parent=39 // pred_fallthru
          _
      $region40: #{tpu_custom_call.1} parent=5 // pred_fallthru
        _
      %p1449 = scmp.le.s32.totalorder 2, %s14
      // Predicated region
      $region45: #{tpu_custom_call.1} parent=5 // pred_check
        %p1450 = pneg %p1449
      $region46: #{tpu_custom_call.1} parent=5 // pred_check_branch
        %1452 = sbr.rel (%p1450) target = $region48
      $region47: #{tpu_custom_call.1} parent=5 // pred_region
        %s1453 = ssub.s32 %s14, 2
        // Predicated region
        $region49: #{tpu_custom_call.1} parent=47 // pred_check
          %p1454 = pneg %p153
        $region50: #{tpu_custom_call.1} parent=47 // pred_check_branch
          %1456 = sbr.rel (%p1454) target = $region52
        $region51: #{tpu_custom_call.1} parent=47 // pred_region
          %s1457 = sand.u32 %s138, 1
          %s1458 = scalar_lea.sflag [#allocation4], %s1457
          %s1459 = sand.u32 %s138, 1
          %s1460 = smul.addr %s1459, 16
          %s1461 = scalar_lea.vmem [#allocation3], %s1460
          %1462 = dma.done %s1458, 256
        $region52: #{tpu_custom_call.1} parent=47 // pred_fallthru
          _
      $region48: #{tpu_custom_call.1} parent=5 // pred_fallthru
        _
    $region6: #{tpu_custom_call.1} parent=1 // loop_footer
      %s18 = sadd.s32 1, %s14
    $region7: #{tpu_custom_call.1} parent=1 // loop_footer_branch
      %13 = sbr.rel target = $region3
    $region8: #{tpu_custom_call.1} parent=1 // loop_exit
      _
    %1463 = vsyncpa [#allocation4], 1
    %s1464 = scalar_lea.sflag [#allocation4], 1
    %1465 = vsyncpa %s1464, 1

</llo_original>
